<compile_context>
chip_gen: v7x
topology: tpu7x:2x2x1
jax: 0.10.0
libtpu: 0.0.40
codegen_flags: <defaults>
</compile_context>

<pallas_src>
import functools

import jax
import jax.numpy as jnp
from jax.experimental import pallas as pl
from jax.experimental.pallas import tpu as pltpu

_LN_EPS = 1e-5


def _round_up(n, m):
    return ((n + m - 1) // m) * m


def _psa_kernel(x_ref, wmain_ref, bwv_ref, wspq_ref, bspq_ref,
                wchz_ref, bchz_ref, g_ref, beta_ref, o_ref, *, cs, hw_valid):
    """Fused PSA forward for one batch element.

    x_ref:     (1, C, HWp) f32   (HW zero-padded to HWp, a multiple of 128)
    wmain_ref: (Mp, C)     bf16  rows [0:cs)=wv weight, row cs=ch_wq weight, rest zero pad
    bwv_ref:   (cs, 1)     f32   wv bias
    wspq_ref:  (cs, C)     bf16  sp_wq weight
    bspq_ref:  (cs, 1)     f32   sp_wq bias
    wchz_ref:  (C, cs)     bf16  ch_wz weight
    bchz_ref:  (C, 1)      f32   ch_wz bias
    g_ref/beta_ref: (C, 1) f32   LayerNorm affine
    o_ref:     (1, C, HWp) out dtype
    """
    x = x_ref[0]                                     # [C, HWp] f32
    xb = x.astype(jnp.bfloat16)                      # MXU operand
    hwp = x.shape[-1]

    # Single stacked 1x1-conv GEMM (value proj + channel query); biases folded out.
    proj = jnp.dot(wmain_ref[...], xb, preferred_element_type=jnp.float32)  # [Mp, HWp]
    wv = proj[:cs, :]                                # [cs, HWp] (bias folded below)
    chq = proj[cs:cs + 1, :]                         # [1, HWp]  channel-query logits

    # ---------------- channel branch ----------------
    if hw_valid != hwp:                              # compile-time branch (pad masking)
        col = jax.lax.broadcasted_iota(jnp.int32, (1, hwp), 1)
        chq = jnp.where(col < hw_valid, chq, jnp.float32(-1e30))
    p = jnp.exp(chq - jnp.max(chq, axis=-1, keepdims=True))                 # [1, HWp]
    # chz = sum_HW(wv_with_bias * softmax) = (wv @ p^T)/sum(p) + b_wv   (MXU, exact)
    chz = jax.lax.dot_general(wv, p, (((1,), (1,)), ((), ())),
                              preferred_element_type=jnp.float32)           # [cs, 1]
    chz = chz / jnp.sum(p, axis=-1, keepdims=True) + bwv_ref[...]

    z = jnp.dot(wchz_ref[...], chz.astype(jnp.bfloat16),
                preferred_element_type=jnp.float32) + bchz_ref[...]         # [C, 1]
    mu = jnp.mean(z, axis=0, keepdims=True)                                 # LayerNorm over C
    var = jnp.mean((z - mu) * (z - mu), axis=0, keepdims=True)
    ch_w = (z - mu) * jax.lax.rsqrt(var + _LN_EPS) * g_ref[...] + beta_ref[...]

    # ---------------- spatial branch ----------------
    # GAP(conv1x1(x)) == conv1x1(GAP(x)) -> never materialise the [cs, HWp] map.
    ones_col = jnp.ones((hwp, 1), jnp.bfloat16)
    xsum = jnp.dot(xb, ones_col, preferred_element_type=jnp.float32)        # [C, 1]
    sq = jnp.dot(wspq_ref[...], xsum.astype(jnp.bfloat16),
                 preferred_element_type=jnp.float32)                        # [cs, 1]
    sq = sq * jnp.float32(1.0 / hw_valid) + bspq_ref[...]                   # pooled logits
    e = jnp.exp(sq - jnp.max(sq, axis=0, keepdims=True))
    pooled = e / jnp.sum(e, axis=0, keepdims=True)                          # softmax over cs
    # sp_w = sum_cs(pooled * wv_with_bias) = pooled^T @ wv + <pooled, b_wv> (MXU, exact)
    sp_w = jax.lax.dot_general(pooled, wv, (((0,), (0,)), ((), ())),
                               preferred_element_type=jnp.float32)          # [1, HWp]
    sp_w = sp_w + jnp.sum(pooled * bwv_ref[...], axis=0, keepdims=True)

    # ---------------- polarized gating ----------------
    gate = jax.nn.sigmoid(ch_w) + jax.nn.sigmoid(sp_w)                      # [C, HWp] broadcast
    o_ref[0] = (gate * x).astype(o_ref.dtype)


def fast_parallel_psa(x, params, *, out_dtype=None):
    """x: [B, C, H, W] -> [B, C, H, W]; matches the PyTorch PSA forward."""
    B, C, H, W = x.shape
    HW = H * W
    HWp = _round_up(HW, 128)                 # lane-dense stores on all generations
    out_dtype = x.dtype if out_dtype is None else out_dtype

    w_wv, b_wv = params["wv"]
    w_chq, _b_chq = params["ch_wq"]          # b_chq is a no-op under the HW softmax
    w_chz, b_chz = params["ch_wz"]
    g, beta = params["ln"]
    w_spq, b_spq = params["sp_wq"]
    Cs = w_wv.shape[0]
    Mp = _round_up(Cs + 1, 16)               # bf16 sublane packing for the stacked weight

    x3 = x.reshape(B, C, HW).astype(jnp.float32)
    if HWp != HW:
        x3 = jnp.pad(x3, ((0, 0), (0, 0), (0, HWp - HW)))

    # Stacked GEMM weight: wv rows, then the single ch_wq row, then zero pad rows.
    wmain = jnp.zeros((Mp, C), jnp.float32)
    wmain = wmain.at[:Cs].set(w_wv).at[Cs].set(w_chq.reshape(C))
    wmain = wmain.astype(jnp.bfloat16)

    bwv = b_wv.reshape(Cs, 1).astype(jnp.float32)
    wspq = w_spq.astype(jnp.bfloat16)                       # [Cs, C]
    bspq = b_spq.reshape(Cs, 1).astype(jnp.float32)
    wchz = w_chz.reshape(C, Cs).astype(jnp.bfloat16)        # bf16: LN renormalises anyway
    bchz = b_chz.reshape(C, 1).astype(jnp.float32)
    g2 = g.reshape(C, 1).astype(jnp.float32)
    beta2 = beta.reshape(C, 1).astype(jnp.float32)

    flops = B * (2 * Mp * C * HWp            # stacked wv/ch_wq GEMM
                 + 2 * Cs * HWp              # chz  (MXU, NT)
                 + 2 * Cs * HWp              # sp_w (MXU, TN)
                 + 2 * C * HWp               # x @ ones (spatial GAP)
                 + 2 * Cs * C                # sp_wq matvec
                 + 2 * C * Cs                # ch_wz matvec
                 + 4 * C * HWp)              # gating elementwise
    transcendentals = B * (2 * HWp + Cs + C)
    out_itemsize = jnp.dtype(out_dtype).itemsize
    bytes_accessed = (B * C * HWp * (4 + out_itemsize)
                      + (wmain.size + wspq.size + wchz.size) * 2
                      + (bwv.size + bspq.size + bchz.size + g2.size + beta2.size) * 4)

    out = pl.pallas_call(
        functools.partial(_psa_kernel, cs=Cs, hw_valid=HW),
        out_shape=jax.ShapeDtypeStruct((B, C, HWp), out_dtype),
        grid_spec=pltpu.PrefetchScalarGridSpec(
            num_scalar_prefetch=0,
            grid=(B,),
            in_specs=[
                pl.BlockSpec((1, C, HWp), lambda b: (b, 0, 0)),   # x (per-batch block)
                pl.BlockSpec((Mp, C), lambda b: (0, 0)),          # stacked wv/ch_wq weight
                pl.BlockSpec((Cs, 1), lambda b: (0, 0)),          # b_wv
                pl.BlockSpec((Cs, C), lambda b: (0, 0)),          # sp_wq weight
                pl.BlockSpec((Cs, 1), lambda b: (0, 0)),          # b_spq
                pl.BlockSpec((C, Cs), lambda b: (0, 0)),          # ch_wz weight
                pl.BlockSpec((C, 1), lambda b: (0, 0)),           # b_chz
                pl.BlockSpec((C, 1), lambda b: (0, 0)),           # LN gamma
                pl.BlockSpec((C, 1), lambda b: (0, 0)),           # LN beta
            ],
            out_specs=pl.BlockSpec((1, C, HWp), lambda b: (b, 0, 0)),
        ),
        compiler_params=pltpu.CompilerParams(
            dimension_semantics=("parallel",),       # batch steps shard across TCs (v7x)
            vmem_limit_bytes=32 * 1024 * 1024,       # explicit ceiling; ~2 MiB needed here
        ),
        cost_estimate=pl.CostEstimate(
            flops=flops, transcendentals=transcendentals, bytes_accessed=bytes_accessed),
    )(x3, wmain, bwv, wspq, bspq, wchz, bchz, g2, beta2)

    if HWp != HW:
        out = out[:, :, :HW]
    return out.reshape(B, C, H, W)


@jax.jit
def psa_forward(x, params):
    return fast_parallel_psa(x, params)


@jax.jit
def psa_reference(x, params):
    """Pure-JAX reference: original op order (full sp_wq map + avg-pool, VPU-style
    reductions), mirroring only the kernel's bf16 weight casts."""
    B, C, H, W = x.shape
    HW = H * W
    w_wv, b_wv = params["wv"]
    w_chq, b_chq = params["ch_wq"]
    w_chz, b_chz = params["ch_wz"]
    g, beta = params["ln"]
    w_spq, b_spq = params["sp_wq"]

    xf = x.reshape(B, C, HW).astype(jnp.float32)
    xb = xf.astype(jnp.bfloat16)

    def proj(wm, bv):
        y = jnp.einsum("oc,bcn->bon", wm.astype(jnp.bfloat16), xb,
                       preferred_element_type=jnp.float32)
        return y + bv[None, :, None]

    wv = proj(w_wv, b_wv)                                        # [B, Cs, HW]
    spq = proj(w_spq, b_spq)                                     # [B, Cs, HW]
    chq = jax.nn.softmax(proj(w_chq, b_chq), axis=-1)            # [B, 1, HW]

    chz = jnp.sum(wv * chq, axis=-1)                             # [B, Cs]
    z = jnp.einsum("oc,bc->bo", w_chz.astype(jnp.bfloat16), chz.astype(jnp.bfloat16),
                   preferred_element_type=jnp.float32) + b_chz[None, :]
    mu = jnp.mean(z, axis=-1, keepdims=True)
    var = jnp.mean((z - mu) ** 2, axis=-1, keepdims=True)
    ch_w = (z - mu) * jax.lax.rsqrt(var + _LN_EPS) * g[None, :] + beta[None, :]

    pooled = jax.nn.softmax(jnp.mean(spq, axis=-1), axis=-1)     # [B, Cs]
    sp_w = jnp.einsum("bo,bon->bn", pooled, wv)                  # [B, HW]

    out = (jax.nn.sigmoid(ch_w)[:, :, None]
           + jax.nn.sigmoid(sp_w)[:, None, :]) * xf
    return out.reshape(B, C, H, W)


def init_psa_params(key, channel=256, squeeze=2):
    """Deterministic init matching PyTorch Conv2d/LayerNorm parameter shapes."""
    cs = channel // squeeze
    ks = jax.random.split(key, 8)

    def conv(kw, kb, cout, cin):
        bound = (1.0 / cin) ** 0.5
        w = jax.random.uniform(kw, (cout, cin), jnp.float32, -bound, bound)
        b = jax.random.uniform(kb, (cout,), jnp.float32, -bound, bound)
        return w, b

    return {
        "wv": conv(ks[0], ks[1], cs, channel),
        "ch_wq": conv(ks[2], ks[3], 1, channel),
        "ch_wz": conv(ks[4], ks[5], channel, cs),
        "ln": (jnp.ones((channel,), jnp.float32), jnp.zeros((channel,), jnp.float32)),
        "sp_wq": conv(ks[6], ks[7], cs, channel),
    }


if __name__ == "__main__":
    key = jax.random.PRNGKey(0)
    pkey, xkey, xkey2 = jax.random.split(key, 3)

    B, C, squeeze = 2, 256, 2
    params = init_psa_params(pkey, channel=C, squeeze=squeeze)

    # 1) Lane-aligned spatial size (HW = 256).
    x = jax.random.normal(xkey, (B, C, 16, 16), dtype=jnp.float32)
    out = jax.block_until_ready(psa_forward(x, params))
    ref = jax.block_until_ready(psa_reference(x, params))
    assert out.shape == x.shape, f"bad shape {out.shape}"
    assert bool(jnp.all(jnp.isfinite(out)))
    err = float(jnp.max(jnp.abs(out - ref)))
    assert err < 2e-2, f"aligned case: max abs err vs reference {err}"

    # 2) Non-multiple-of-128 spatial size (HW = 196 -> padded to 256, masked softmax/mean).
    x2 = jax.random.normal(xkey2, (B, C, 14, 14), dtype=jnp.float32)
    out2 = jax.block_until_ready(psa_forward(x2, params))
    ref2 = jax.block_until_ready(psa_reference(x2, params))
    assert out2.shape == x2.shape, f"bad shape {out2.shape}"
    assert bool(jnp.all(jnp.isfinite(out2)))
    err2 = float(jnp.max(jnp.abs(out2 - ref2)))
    assert err2 < 2e-2, f"padded case: max abs err vs reference {err2}"

    print("KERNEL_OK")
</pallas_src>

<mosaic_0001>
module attributes {stable_mosaic.version = 11 : i64} {
  func.func @_psa_kernel(%arg0: i32, %arg1: memref<1x256x256xf32, #tpu.memory_space<vmem>>, %arg2: memref<144x256xbf16, #tpu.memory_space<vmem>>, %arg3: memref<128x1xf32, #tpu.memory_space<vmem>>, %arg4: memref<128x256xbf16, #tpu.memory_space<vmem>>, %arg5: memref<128x1xf32, #tpu.memory_space<vmem>>, %arg6: memref<256x128xbf16, #tpu.memory_space<vmem>>, %arg7: memref<256x1xf32, #tpu.memory_space<vmem>>, %arg8: memref<256x1xf32, #tpu.memory_space<vmem>>, %arg9: memref<256x1xf32, #tpu.memory_space<vmem>>, %arg10: memref<1x256x256xf32, #tpu.memory_space<vmem>>) attributes {dimension_semantics = [#tpu.dimension_semantics<parallel>], iteration_bounds = array<i64: 2>, scalar_prefetch = 0 : i64, scratch_operands = 0 : i64, tpu.core_type = #tpu.core_type<tc>, window_params = [{transform_indices = @transform_0, window_bounds = array<i64: 1, 256, 256>}, {pipeline_mode = #tpu.pipeline_mode<synchronous>, transform_indices = @transform_1, window_bounds = array<i64: 144, 256>}, {pipeline_mode = #tpu.pipeline_mode<synchronous>, transform_indices = @transform_2, window_bounds = array<i64: 128, 1>}, {pipeline_mode = #tpu.pipeline_mode<synchronous>, transform_indices = @transform_3, window_bounds = array<i64: 128, 256>}, {pipeline_mode = #tpu.pipeline_mode<synchronous>, transform_indices = @transform_4, window_bounds = array<i64: 128, 1>}, {pipeline_mode = #tpu.pipeline_mode<synchronous>, transform_indices = @transform_5, window_bounds = array<i64: 256, 128>}, {pipeline_mode = #tpu.pipeline_mode<synchronous>, transform_indices = @transform_6, window_bounds = array<i64: 256, 1>}, {pipeline_mode = #tpu.pipeline_mode<synchronous>, transform_indices = @transform_7, window_bounds = array<i64: 256, 1>}, {pipeline_mode = #tpu.pipeline_mode<synchronous>, transform_indices = @transform_8, window_bounds = array<i64: 256, 1>}, {transform_indices = @transform_9, window_bounds = array<i64: 1, 256, 256>}]} {
    %c0 = arith.constant 0 : index
    %c0_0 = arith.constant 0 : index
    %c0_1 = arith.constant 0 : index
    %0 = vector.load %arg1[%c0, %c0_0, %c0_1] : memref<1x256x256xf32, #tpu.memory_space<vmem>>, vector<1x256x256xf32>
    %1 = vector.shape_cast %0 : vector<1x256x256xf32> to vector<256x256xf32>
    %2 = arith.truncf %1 : vector<256x256xf32> to vector<256x256xbf16>
    %c0_2 = arith.constant 0 : index
    %c0_3 = arith.constant 0 : index
    %3 = vector.load %arg2[%c0_2, %c0_3] : memref<144x256xbf16, #tpu.memory_space<vmem>>, vector<144x256xbf16>
    %cst = arith.constant dense<0.000000e+00> : vector<144x256xf32>
    %4 = tpu.matmul %3, %2, %cst {dimension_numbers = #tpu.dot_dimension_numbers<[1], [0], [0], [1], [0, 0, 1, 1], [], []>} : vector<144x256xbf16>, vector<256x256xbf16>, vector<144x256xf32> -> vector<144x256xf32>
    %5 = vector.extract_strided_slice %4 {offsets = [0, 0], sizes = [128, 256], strides = [1, 1]} : vector<144x256xf32> to vector<128x256xf32>
    %6 = vector.extract_strided_slice %4 {offsets = [128, 0], sizes = [1, 256], strides = [1, 1]} : vector<144x256xf32> to vector<1x256xf32>
    %cst_4 = arith.constant dense<0xFF800000> : vector<1xf32>
    %7 = vector.multi_reduction <maximumf>, %6, %cst_4 [1] : vector<1x256xf32> to vector<1xf32>
    %8 = vector.shape_cast %7 : vector<1xf32> to vector<1x1xf32>
    %9 = vector.broadcast %8 : vector<1x1xf32> to vector<1x256xf32>
    %10 = arith.subf %6, %9 : vector<1x256xf32>
    %11 = math.exp %10 : vector<1x256xf32>
    %cst_5 = arith.constant dense<0.000000e+00> : vector<128x1xf32>
    %12 = tpu.matmul %5, %11, %cst_5 {dimension_numbers = #tpu.dot_dimension_numbers<[1], [1], [0], [0], [0, 0, 1, 0], [], []>} : vector<128x256xf32>, vector<1x256xf32>, vector<128x1xf32> -> vector<128x1xf32>
    %cst_6 = arith.constant dense<0.000000e+00> : vector<1xf32>
    %13 = vector.multi_reduction <add>, %11, %cst_6 [1] : vector<1x256xf32> to vector<1xf32>
    %14 = vector.shape_cast %13 : vector<1xf32> to vector<1x1xf32>
    %15 = vector.broadcast %14 : vector<1x1xf32> to vector<128x1xf32>
    %16 = arith.divf %12, %15 : vector<128x1xf32>
    %c0_7 = arith.constant 0 : index
    %c0_8 = arith.constant 0 : index
    %17 = vector.load %arg3[%c0_7, %c0_8] : memref<128x1xf32, #tpu.memory_space<vmem>>, vector<128x1xf32>
    %18 = arith.addf %16, %17 : vector<128x1xf32>
    %c0_9 = arith.constant 0 : index
    %c0_10 = arith.constant 0 : index
    %19 = vector.load %arg6[%c0_9, %c0_10] : memref<256x128xbf16, #tpu.memory_space<vmem>>, vector<256x128xbf16>
    %20 = arith.truncf %18 : vector<128x1xf32> to vector<128x1xbf16>
    %cst_11 = arith.constant dense<0.000000e+00> : vector<256x1xf32>
    %21 = tpu.matmul %19, %20, %cst_11 {dimension_numbers = #tpu.dot_dimension_numbers<[1], [0], [0], [1], [0, 0, 1, 1], [], []>} : vector<256x128xbf16>, vector<128x1xbf16>, vector<256x1xf32> -> vector<256x1xf32>
    %c0_12 = arith.constant 0 : index
    %c0_13 = arith.constant 0 : index
    %22 = vector.load %arg7[%c0_12, %c0_13] : memref<256x1xf32, #tpu.memory_space<vmem>>, vector<256x1xf32>
    %23 = arith.addf %21, %22 : vector<256x1xf32>
    %cst_14 = arith.constant dense<0.000000e+00> : vector<1xf32>
    %24 = vector.multi_reduction <add>, %23, %cst_14 [0] : vector<256x1xf32> to vector<1xf32>
    %25 = vector.shape_cast %24 : vector<1xf32> to vector<1x1xf32>
    %cst_15 = arith.constant 2.560000e+02 : f32
    %26 = vector.broadcast %cst_15 : f32 to vector<1x1xf32>
    %27 = arith.divf %25, %26 : vector<1x1xf32>
    %28 = vector.broadcast %27 : vector<1x1xf32> to vector<256x1xf32>
    %29 = arith.subf %23, %28 : vector<256x1xf32>
    %30 = vector.broadcast %27 : vector<1x1xf32> to vector<256x1xf32>
    %31 = arith.subf %23, %30 : vector<256x1xf32>
    %32 = arith.mulf %29, %31 : vector<256x1xf32>
    %cst_16 = arith.constant dense<0.000000e+00> : vector<1xf32>
    %33 = vector.multi_reduction <add>, %32, %cst_16 [0] : vector<256x1xf32> to vector<1xf32>
    %34 = vector.shape_cast %33 : vector<1xf32> to vector<1x1xf32>
    %cst_17 = arith.constant 2.560000e+02 : f32
    %35 = vector.broadcast %cst_17 : f32 to vector<1x1xf32>
    %36 = arith.divf %34, %35 : vector<1x1xf32>
    %37 = vector.broadcast %27 : vector<1x1xf32> to vector<256x1xf32>
    %38 = arith.subf %23, %37 : vector<256x1xf32>
    %cst_18 = arith.constant 9.99999974E-6 : f32
    %39 = vector.broadcast %cst_18 : f32 to vector<1x1xf32>
    %40 = arith.addf %36, %39 : vector<1x1xf32>
    %41 = math.rsqrt %40 : vector<1x1xf32>
    %42 = vector.broadcast %41 : vector<1x1xf32> to vector<256x1xf32>
    %43 = arith.mulf %38, %42 : vector<256x1xf32>
    %c0_19 = arith.constant 0 : index
    %c0_20 = arith.constant 0 : index
    %44 = vector.load %arg8[%c0_19, %c0_20] : memref<256x1xf32, #tpu.memory_space<vmem>>, vector<256x1xf32>
    %45 = arith.mulf %43, %44 : vector<256x1xf32>
    %c0_21 = arith.constant 0 : index
    %c0_22 = arith.constant 0 : index
    %46 = vector.load %arg9[%c0_21, %c0_22] : memref<256x1xf32, #tpu.memory_space<vmem>>, vector<256x1xf32>
    %47 = arith.addf %45, %46 : vector<256x1xf32>
    %cst_23 = arith.constant 1.000000e+00 : bf16
    %48 = vector.broadcast %cst_23 : bf16 to vector<256x1xbf16>
    %cst_24 = arith.constant dense<0.000000e+00> : vector<256x1xf32>
    %49 = tpu.matmul %2, %48, %cst_24 {dimension_numbers = #tpu.dot_dimension_numbers<[1], [0], [0], [1], [0, 0, 1, 1], [], []>} : vector<256x256xbf16>, vector<256x1xbf16>, vector<256x1xf32> -> vector<256x1xf32>
    %c0_25 = arith.constant 0 : index
    %c0_26 = arith.constant 0 : index
    %50 = vector.load %arg4[%c0_25, %c0_26] : memref<128x256xbf16, #tpu.memory_space<vmem>>, vector<128x256xbf16>
    %51 = arith.truncf %49 : vector<256x1xf32> to vector<256x1xbf16>
    %cst_27 = arith.constant dense<0.000000e+00> : vector<128x1xf32>
    %52 = tpu.matmul %50, %51, %cst_27 {dimension_numbers = #tpu.dot_dimension_numbers<[1], [0], [0], [1], [0, 0, 1, 1], [], []>} : vector<128x256xbf16>, vector<256x1xbf16>, vector<128x1xf32> -> vector<128x1xf32>
    %cst_28 = arith.constant 3.906250e-03 : f32
    %53 = vector.broadcast %cst_28 : f32 to vector<128x1xf32>
    %54 = arith.mulf %52, %53 : vector<128x1xf32>
    %c0_29 = arith.constant 0 : index
    %c0_30 = arith.constant 0 : index
    %55 = vector.load %arg5[%c0_29, %c0_30] : memref<128x1xf32, #tpu.memory_space<vmem>>, vector<128x1xf32>
    %56 = arith.addf %54, %55 : vector<128x1xf32>
    %cst_31 = arith.constant dense<0xFF800000> : vector<1xf32>
    %57 = vector.multi_reduction <maximumf>, %56, %cst_31 [0] : vector<128x1xf32> to vector<1xf32>
    %58 = vector.shape_cast %57 : vector<1xf32> to vector<1x1xf32>
    %59 = vector.broadcast %58 : vector<1x1xf32> to vector<128x1xf32>
    %60 = arith.subf %56, %59 : vector<128x1xf32>
    %61 = math.exp %60 : vector<128x1xf32>
    %cst_32 = arith.constant dense<0.000000e+00> : vector<1xf32>
    %62 = vector.multi_reduction <add>, %61, %cst_32 [0] : vector<128x1xf32> to vector<1xf32>
    %63 = vector.shape_cast %62 : vector<1xf32> to vector<1x1xf32>
    %64 = vector.broadcast %63 : vector<1x1xf32> to vector<128x1xf32>
    %65 = arith.divf %61, %64 : vector<128x1xf32>
    %cst_33 = arith.constant dense<0.000000e+00> : vector<1x256xf32>
    %66 = tpu.matmul %65, %5, %cst_33 {dimension_numbers = #tpu.dot_dimension_numbers<[0], [0], [1], [1], [0, 1, 1, 1], [], []>} : vector<128x1xf32>, vector<128x256xf32>, vector<1x256xf32> -> vector<1x256xf32>
    %c0_34 = arith.constant 0 : index
    %c0_35 = arith.constant 0 : index
    %67 = vector.load %arg3[%c0_34, %c0_35] : memref<128x1xf32, #tpu.memory_space<vmem>>, vector<128x1xf32>
    %68 = arith.mulf %65, %67 : vector<128x1xf32>
    %cst_36 = arith.constant dense<0.000000e+00> : vector<1xf32>
    %69 = vector.multi_reduction <add>, %68, %cst_36 [0] : vector<128x1xf32> to vector<1xf32>
    %70 = vector.shape_cast %69 : vector<1xf32> to vector<1x1xf32>
    %71 = vector.broadcast %70 : vector<1x1xf32> to vector<1x256xf32>
    %72 = arith.addf %66, %71 : vector<1x256xf32>
    %73 = arith.negf %47 : vector<256x1xf32>
    %74 = math.exp %73 : vector<256x1xf32>
    %cst_37 = arith.constant 1.000000e+00 : f32
    %75 = vector.broadcast %cst_37 : f32 to vector<256x1xf32>
    %76 = arith.addf %75, %74 : vector<256x1xf32>
    %77 = arith.divf %75, %76 : vector<256x1xf32>
    %78 = arith.negf %72 : vector<1x256xf32>
    %79 = math.exp %78 : vector<1x256xf32>
    %cst_38 = arith.constant 1.000000e+00 : f32
    %80 = vector.broadcast %cst_38 : f32 to vector<1x256xf32>
    %81 = arith.addf %80, %79 : vector<1x256xf32>
    %82 = arith.divf %80, %81 : vector<1x256xf32>
    %83 = vector.broadcast %77 : vector<256x1xf32> to vector<256x256xf32>
    %84 = vector.broadcast %82 : vector<1x256xf32> to vector<256x256xf32>
    %85 = arith.addf %83, %84 : vector<256x256xf32>
    %86 = arith.mulf %85, %1 : vector<256x256xf32>
    %c0_39 = arith.constant 0 : index
    %c0_40 = arith.constant 0 : index
    %c0_41 = arith.constant 0 : index
    %87 = vector.load %arg10[%c0_39, %c0_40, %c0_41] : memref<1x256x256xf32, #tpu.memory_space<vmem>>, vector<1x256x256xf32>
    %88 = vector.shape_cast %87 : vector<1x256x256xf32> to vector<256x256xf32>
    %89 = vector.shape_cast %86 : vector<256x256xf32> to vector<1x256x256xf32>
    tpu.vector_store %arg10[%c0_39, %c0_40, %c0_41], %89 {strides = array<i32>} : memref<1x256x256xf32, #tpu.memory_space<vmem>>, vector<1x256x256xf32>,
    return
  }
  func.func @transform_0(%arg0: i32) -> (i32, i32, i32) {
    %c0_i32 = arith.constant 0 : i32
    %c0_i32_0 = arith.constant 0 : i32
    %c0_i32_1 = arith.constant 0 : i32
    return %arg0, %c0_i32, %c0_i32_0 : i32, i32, i32
  }
  func.func @transform_1(%arg0: i32) -> (i32, i32) {
    %c0_i32 = arith.constant 0 : i32
    %c0_i32_0 = arith.constant 0 : i32
    %c0_i32_1 = arith.constant 0 : i32
    return %c0_i32, %c0_i32_0 : i32, i32
  }
  func.func @transform_2(%arg0: i32) -> (i32, i32) {
    %c0_i32 = arith.constant 0 : i32
    %c0_i32_0 = arith.constant 0 : i32
    %c0_i32_1 = arith.constant 0 : i32
    return %c0_i32, %c0_i32_0 : i32, i32
  }
  func.func @transform_3(%arg0: i32) -> (i32, i32) {
    %c0_i32 = arith.constant 0 : i32
    %c0_i32_0 = arith.constant 0 : i32
    %c0_i32_1 = arith.constant 0 : i32
    return %c0_i32, %c0_i32_0 : i32, i32
  }
  func.func @transform_4(%arg0: i32) -> (i32, i32) {
    %c0_i32 = arith.constant 0 : i32
    %c0_i32_0 = arith.constant 0 : i32
    %c0_i32_1 = arith.constant 0 : i32
    return %c0_i32, %c0_i32_0 : i32, i32
  }
  func.func @transform_5(%arg0: i32) -> (i32, i32) {
    %c0_i32 = arith.constant 0 : i32
    %c0_i32_0 = arith.constant 0 : i32
    %c0_i32_1 = arith.constant 0 : i32
    return %c0_i32, %c0_i32_0 : i32, i32
  }
  func.func @transform_6(%arg0: i32) -> (i32, i32) {
    %c0_i32 = arith.constant 0 : i32
    %c0_i32_0 = arith.constant 0 : i32
    %c0_i32_1 = arith.constant 0 : i32
    return %c0_i32, %c0_i32_0 : i32, i32
  }
  func.func @transform_7(%arg0: i32) -> (i32, i32) {
    %c0_i32 = arith.constant 0 : i32
    %c0_i32_0 = arith.constant 0 : i32
    %c0_i32_1 = arith.constant 0 : i32
    return %c0_i32, %c0_i32_0 : i32, i32
  }
  func.func @transform_8(%arg0: i32) -> (i32, i32) {
    %c0_i32 = arith.constant 0 : i32
    %c0_i32_0 = arith.constant 0 : i32
    %c0_i32_1 = arith.constant 0 : i32
    return %c0_i32, %c0_i32_0 : i32, i32
  }
  func.func @transform_9(%arg0: i32) -> (i32, i32, i32) {
    %c0_i32 = arith.constant 0 : i32
    %c0_i32_0 = arith.constant 0 : i32
    %c0_i32_1 = arith.constant 0 : i32
    return %arg0, %c0_i32, %c0_i32_0 : i32, i32, i32
  }
}

</mosaic_0001>

<llo_original>
// kernel: psa_forward.1
$region0: #{psa_forward.1}
  #allocation0 [shape = 'u32[]', space=smem, size = 0x4, offset = 0x4, fixed_abs, tag = 'smem constant byte address 0x4 - core index']
  #allocation1 [shape = 'u32[144,128]{1,0:T(1,128)}', space=vmem, size = 0x12000, scoped, tag = 'internal scratch']
  %s0 = inlined_call_operand.vmem [shape: f32[2,256,256], index: 0, kind: input, shape index: {}]
  %s1 = inlined_call_operand.vmem [shape: bf16[144,256], index: 1, kind: input, shape index: {}]
  %s2 = inlined_call_operand.vmem [shape: f32[128,1], index: 2, kind: input, shape index: {}]
  %s3 = inlined_call_operand.vmem [shape: bf16[128,256], index: 3, kind: input, shape index: {}]
  %s4 = inlined_call_operand.vmem [shape: f32[128,1], index: 4, kind: input, shape index: {}]
  %s5 = inlined_call_operand.vmem [shape: bf16[256,128], index: 5, kind: input, shape index: {}]
  %s6 = inlined_call_operand.vmem [shape: f32[256,1], index: 6, kind: input, shape index: {}]
  %s7 = inlined_call_operand.vmem [shape: f32[256,1], index: 7, kind: input, shape index: {}]
  %s8 = inlined_call_operand.vmem [shape: f32[256,1], index: 8, kind: input, shape index: {}]
  %s9 = inlined_call_operand.vmem [shape: f32[2,256,256], index: 9, kind: output, shape index: {}]
  %s10 = sld [smem:[#allocation0]]
  $region69: #{psa_forward.1} parent=0
    _
  %s12 = ssub.s32 1, %s10
  %s13 = scalar_select 0, %s12, %s10
  loop: start=0, step=1, limit=4
  $region2: #{psa_forward.1} parent=0 // loop_pre_header
    _
  $region3: #{psa_forward.1} parent=0 // loop_header
    %s15 = sphi 0, %s19
    %p16 = scmp.ge.s32.totalorder %s15, 4
    %s25 = sphi 0, %s27
    %s28 = sphi 0, %s25
    %s29 = sphi 0, %s28
    %s45 = sphi 0, %s29
    %s49 = sphi 0, %s49
    %s51 = sphi 0, %s49
    %s52 = sphi 0, %s51
    %s66 = sphi 0, %s52
    %s70 = sphi 0, %s70
    %s72 = sphi 0, %s70
    %s73 = sphi 0, %s72
    %s87 = sphi 0, %s73
    %s91 = sphi 0, %s91
    %s93 = sphi 0, %s91
    %s94 = sphi 0, %s93
    %s108 = sphi 0, %s94
    %s112 = sphi 0, %s112
    %s114 = sphi 0, %s112
    %s115 = sphi 0, %s114
    %s129 = sphi 0, %s115
    %s133 = sphi 0, %s133
    %s135 = sphi 0, %s133
    %s136 = sphi 0, %s135
    %s150 = sphi 0, %s136
    %s154 = sphi 0, %s154
    %s156 = sphi 0, %s154
    %s157 = sphi 0, %s156
    %s171 = sphi 0, %s157
    %s175 = sphi 0, %s175
    %s177 = sphi 0, %s175
    %s178 = sphi 0, %s177
    %s192 = sphi 0, %s178
    %s196 = sphi 0, %s196
    %s198 = sphi 0, %s196
    %s199 = sphi 0, %s198
    %s213 = sphi 0, %s199
    %s219 = sphi 0, %s221
    %s222 = sphi 0, %s219
    %s223 = sphi 0, %s222
    %s239 = sphi 0, %s223
  $region4: #{psa_forward.1} parent=0 // loop_header_branch
    %18 = sbr.rel (%p16) target = $region8
  $region5: #{psa_forward.1} parent=0 // loop_body
    %s20 = ssub.s32 %s15, 1
    %s21 = ssub.s32 %s15, 2
    %s22 = sadd.s32 %s15, 1
    %s23 = ssub.s32 %s15, %s22
    %p24 = scmp.eq.s32.totalorder %s23, 0
    %s26 = sadd.s32 %s25, 1
    %s27 = scalar_select %p24, %s25, %s26
    %p30 = pneg %p24
    %p31 = scmp.eq.s32.totalorder %s15, 1
    %p32 = por %p30, %p31
    %p33 = scmp.ne.s32.totalorder %s25, %s28
    %p34 = scmp.eq.s32.totalorder %s15, 0
    %p35 = por %p33, %p34
    %p36 = scmp.ne.s32.totalorder %s25, %s28
    %p37 = scmp.eq.s32.totalorder %s20, 1
    %p38 = por %p36, %p37
    %p39 = scmp.ne.s32.totalorder %s28, %s29
    %p40 = scmp.eq.s32.totalorder %s20, 0
    %p41 = por %p39, %p40
    %p42 = scmp.ne.s32.totalorder %s28, %s29
    %p43 = scmp.eq.s32.totalorder %s21, 1
    %p44 = por %p42, %p43
    %p46 = scmp.ne.s32.totalorder %s29, %s45
    %p47 = scmp.eq.s32.totalorder %s21, 0
    %p48 = por %p46, %p47
    %s50 = sadd.s32 %s49, 1
    %p53 = scmp.eq.s32.totalorder %s15, 1
    %p54 = scmp.ne.s32.totalorder %s49, %s51
    %p55 = scmp.eq.s32.totalorder %s15, 0
    %p56 = por %p54, %p55
    %p57 = scmp.ne.s32.totalorder %s49, %s51
    %p58 = scmp.eq.s32.totalorder %s20, 1
    %p59 = por %p57, %p58
    %p60 = scmp.ne.s32.totalorder %s51, %s52
    %p61 = scmp.eq.s32.totalorder %s20, 0
    %p62 = por %p60, %p61
    %p63 = scmp.ne.s32.totalorder %s51, %s52
    %p64 = scmp.eq.s32.totalorder %s21, 1
    %p65 = por %p63, %p64
    %p67 = scmp.ne.s32.totalorder %s52, %s66
    %p68 = scmp.eq.s32.totalorder %s21, 0
    %p69 = por %p67, %p68
    %s71 = sadd.s32 %s70, 1
    %p74 = scmp.eq.s32.totalorder %s15, 1
    %p75 = scmp.ne.s32.totalorder %s70, %s72
    %p76 = scmp.eq.s32.totalorder %s15, 0
    %p77 = por %p75, %p76
    %p78 = scmp.ne.s32.totalorder %s70, %s72
    %p79 = scmp.eq.s32.totalorder %s20, 1
    %p80 = por %p78, %p79
    %p81 = scmp.ne.s32.totalorder %s72, %s73
    %p82 = scmp.eq.s32.totalorder %s20, 0
    %p83 = por %p81, %p82
    %p84 = scmp.ne.s32.totalorder %s72, %s73
    %p85 = scmp.eq.s32.totalorder %s21, 1
    %p86 = por %p84, %p85
    %p88 = scmp.ne.s32.totalorder %s73, %s87
    %p89 = scmp.eq.s32.totalorder %s21, 0
    %p90 = por %p88, %p89
    %s92 = sadd.s32 %s91, 1
    %p95 = scmp.eq.s32.totalorder %s15, 1
    %p96 = scmp.ne.s32.totalorder %s91, %s93
    %p97 = scmp.eq.s32.totalorder %s15, 0
    %p98 = por %p96, %p97
    %p99 = scmp.ne.s32.totalorder %s91, %s93
    %p100 = scmp.eq.s32.totalorder %s20, 1
    %p101 = por %p99, %p100
    %p102 = scmp.ne.s32.totalorder %s93, %s94
    %p103 = scmp.eq.s32.totalorder %s20, 0
    %p104 = por %p102, %p103
    %p105 = scmp.ne.s32.totalorder %s93, %s94
    %p106 = scmp.eq.s32.totalorder %s21, 1
    %p107 = por %p105, %p106
    %p109 = scmp.ne.s32.totalorder %s94, %s108
    %p110 = scmp.eq.s32.totalorder %s21, 0
    %p111 = por %p109, %p110
    %s113 = sadd.s32 %s112, 1
    %p116 = scmp.eq.s32.totalorder %s15, 1
    %p117 = scmp.ne.s32.totalorder %s112, %s114
    %p118 = scmp.eq.s32.totalorder %s15, 0
    %p119 = por %p117, %p118
    %p120 = scmp.ne.s32.totalorder %s112, %s114
    %p121 = scmp.eq.s32.totalorder %s20, 1
    %p122 = por %p120, %p121
    %p123 = scmp.ne.s32.totalorder %s114, %s115
    %p124 = scmp.eq.s32.totalorder %s20, 0
    %p125 = por %p123, %p124
    %p126 = scmp.ne.s32.totalorder %s114, %s115
    %p127 = scmp.eq.s32.totalorder %s21, 1
    %p128 = por %p126, %p127
    %p130 = scmp.ne.s32.totalorder %s115, %s129
    %p131 = scmp.eq.s32.totalorder %s21, 0
    %p132 = por %p130, %p131
    %s134 = sadd.s32 %s133, 1
    %p137 = scmp.eq.s32.totalorder %s15, 1
    %p138 = scmp.ne.s32.totalorder %s133, %s135
    %p139 = scmp.eq.s32.totalorder %s15, 0
    %p140 = por %p138, %p139
    %p141 = scmp.ne.s32.totalorder %s133, %s135
    %p142 = scmp.eq.s32.totalorder %s20, 1
    %p143 = por %p141, %p142
    %p144 = scmp.ne.s32.totalorder %s135, %s136
    %p145 = scmp.eq.s32.totalorder %s20, 0
    %p146 = por %p144, %p145
    %p147 = scmp.ne.s32.totalorder %s135, %s136
    %p148 = scmp.eq.s32.totalorder %s21, 1
    %p149 = por %p147, %p148
    %p151 = scmp.ne.s32.totalorder %s136, %s150
    %p152 = scmp.eq.s32.totalorder %s21, 0
    %p153 = por %p151, %p152
    %s155 = sadd.s32 %s154, 1
    %p158 = scmp.eq.s32.totalorder %s15, 1
    %p159 = scmp.ne.s32.totalorder %s154, %s156
    %p160 = scmp.eq.s32.totalorder %s15, 0
    %p161 = por %p159, %p160
    %p162 = scmp.ne.s32.totalorder %s154, %s156
    %p163 = scmp.eq.s32.totalorder %s20, 1
    %p164 = por %p162, %p163
    %p165 = scmp.ne.s32.totalorder %s156, %s157
    %p166 = scmp.eq.s32.totalorder %s20, 0
    %p167 = por %p165, %p166
    %p168 = scmp.ne.s32.totalorder %s156, %s157
    %p169 = scmp.eq.s32.totalorder %s21, 1
    %p170 = por %p168, %p169
    %p172 = scmp.ne.s32.totalorder %s157, %s171
    %p173 = scmp.eq.s32.totalorder %s21, 0
    %p174 = por %p172, %p173
    %s176 = sadd.s32 %s175, 1
    %p179 = scmp.eq.s32.totalorder %s15, 1
    %p180 = scmp.ne.s32.totalorder %s175, %s177
    %p181 = scmp.eq.s32.totalorder %s15, 0
    %p182 = por %p180, %p181
    %p183 = scmp.ne.s32.totalorder %s175, %s177
    %p184 = scmp.eq.s32.totalorder %s20, 1
    %p185 = por %p183, %p184
    %p186 = scmp.ne.s32.totalorder %s177, %s178
    %p187 = scmp.eq.s32.totalorder %s20, 0
    %p188 = por %p186, %p187
    %p189 = scmp.ne.s32.totalorder %s177, %s178
    %p190 = scmp.eq.s32.totalorder %s21, 1
    %p191 = por %p189, %p190
    %p193 = scmp.ne.s32.totalorder %s178, %s192
    %p194 = scmp.eq.s32.totalorder %s21, 0
    %p195 = por %p193, %p194
    %s197 = sadd.s32 %s196, 1
    %p200 = scmp.eq.s32.totalorder %s15, 1
    %p201 = scmp.ne.s32.totalorder %s196, %s198
    %p202 = scmp.eq.s32.totalorder %s15, 0
    %p203 = por %p201, %p202
    %p204 = scmp.ne.s32.totalorder %s196, %s198
    %p205 = scmp.eq.s32.totalorder %s20, 1
    %p206 = por %p204, %p205
    %p207 = scmp.ne.s32.totalorder %s198, %s199
    %p208 = scmp.eq.s32.totalorder %s20, 0
    %p209 = por %p207, %p208
    %p210 = scmp.ne.s32.totalorder %s198, %s199
    %p211 = scmp.eq.s32.totalorder %s21, 1
    %p212 = por %p210, %p211
    %p214 = scmp.ne.s32.totalorder %s199, %s213
    %p215 = scmp.eq.s32.totalorder %s21, 0
    %p216 = por %p214, %p215
    %s217 = ssub.s32 %s15, %s22
    %p218 = scmp.eq.s32.totalorder %s217, 0
    %s220 = sadd.s32 %s219, 1
    %s221 = scalar_select %p218, %s219, %s220
    %p224 = pneg %p218
    %p225 = scmp.eq.s32.totalorder %s15, 1
    %p226 = por %p224, %p225
    %p227 = scmp.ne.s32.totalorder %s219, %s222
    %p228 = scmp.eq.s32.totalorder %s15, 0
    %p229 = por %p227, %p228
    %p230 = scmp.ne.s32.totalorder %s219, %s222
    %p231 = scmp.eq.s32.totalorder %s20, 1
    %p232 = por %p230, %p231
    %p233 = scmp.ne.s32.totalorder %s222, %s223
    %p234 = scmp.eq.s32.totalorder %s20, 0
    %p235 = por %p233, %p234
    %p236 = scmp.ne.s32.totalorder %s222, %s223
    %p237 = scmp.eq.s32.totalorder %s21, 1
    %p238 = por %p236, %p237
    %p240 = scmp.ne.s32.totalorder %s223, %s239
    %p241 = scmp.eq.s32.totalorder %s21, 0
    %p242 = por %p240, %p241
    %p243 = scmp.le.s32.totalorder 1, %s15
    %p244 = scmp.lt.s32.totalorder %s15, 3
    %p245 = pnand %p243, %p244
    %p246 = pneg %p245
    // Predicated region
    $region9: #{psa_forward.1} parent=5 // pred_check
      _
    $region10: #{psa_forward.1} parent=5 // pred_check_branch
      %248 = sbr.rel (%p245) target = $region12
    $region11: #{psa_forward.1} parent=5 // pred_region
      %s249 = ssub.s32 %s15, 1
      // Predicated region
      $region13: #{psa_forward.1} parent=11 // pred_check
        %p250 = pneg %p62
      $region14: #{psa_forward.1} parent=11 // pred_check_branch
        %252 = sbr.rel (%p250) target = $region16
      $region15: #{psa_forward.1} parent=11 // pred_region
        _
      $region16: #{psa_forward.1} parent=11 // pred_fallthru
        _
      // Predicated region
      $region17: #{psa_forward.1} parent=11 // pred_check
        %p253 = pneg %p83
      $region18: #{psa_forward.1} parent=11 // pred_check_branch
        %255 = sbr.rel (%p253) target = $region20
      $region19: #{psa_forward.1} parent=11 // pred_region
        _
      $region20: #{psa_forward.1} parent=11 // pred_fallthru
        _
      // Predicated region
      $region21: #{psa_forward.1} parent=11 // pred_check
        %p256 = pneg %p104
      $region22: #{psa_forward.1} parent=11 // pred_check_branch
        %258 = sbr.rel (%p256) target = $region24
      $region23: #{psa_forward.1} parent=11 // pred_region
        _
      $region24: #{psa_forward.1} parent=11 // pred_fallthru
        _
      // Predicated region
      $region25: #{psa_forward.1} parent=11 // pred_check
        %p259 = pneg %p125
      $region26: #{psa_forward.1} parent=11 // pred_check_branch
        %261 = sbr.rel (%p259) target = $region28
      $region27: #{psa_forward.1} parent=11 // pred_region
        _
      $region28: #{psa_forward.1} parent=11 // pred_fallthru
        _
      // Predicated region
      $region29: #{psa_forward.1} parent=11 // pred_check
        %p262 = pneg %p146
      $region30: #{psa_forward.1} parent=11 // pred_check_branch
        %264 = sbr.rel (%p262) target = $region32
      $region31: #{psa_forward.1} parent=11 // pred_region
        _
      $region32: #{psa_forward.1} parent=11 // pred_fallthru
        _
      // Predicated region
      $region33: #{psa_forward.1} parent=11 // pred_check
        %p265 = pneg %p167
      $region34: #{psa_forward.1} parent=11 // pred_check_branch
        %267 = sbr.rel (%p265) target = $region36
      $region35: #{psa_forward.1} parent=11 // pred_region
        _
      $region36: #{psa_forward.1} parent=11 // pred_fallthru
        _
      // Predicated region
      $region37: #{psa_forward.1} parent=11 // pred_check
        %p268 = pneg %p188
      $region38: #{psa_forward.1} parent=11 // pred_check_branch
        %270 = sbr.rel (%p268) target = $region40
      $region39: #{psa_forward.1} parent=11 // pred_region
        _
      $region40: #{psa_forward.1} parent=11 // pred_fallthru
        _
      // Predicated region
      $region41: #{psa_forward.1} parent=11 // pred_check
        %p271 = pneg %p209
      $region42: #{psa_forward.1} parent=11 // pred_check_branch
        %273 = sbr.rel (%p271) target = $region44
      $region43: #{psa_forward.1} parent=11 // pred_region
        _
      $region44: #{psa_forward.1} parent=11 // pred_fallthru
        _
    $region12: #{psa_forward.1} parent=5 // pred_fallthru
      _
    %p274 = scmp.lt.s32.totalorder %s15, 2
    // Predicated region
    $region45: #{psa_forward.1} parent=5 // pred_check
      %p275 = pneg %p274
    $region46: #{psa_forward.1} parent=5 // pred_check_branch
      %277 = sbr.rel (%p275) target = $region48
    $region47: #{psa_forward.1} parent=5 // pred_region
      // Predicated region
      $region49: #{psa_forward.1} parent=47 // pred_check
        %p278 = pneg %p35
      $region50: #{psa_forward.1} parent=47 // pred_check_branch
        %280 = sbr.rel (%p278) target = $region52
      $region51: #{psa_forward.1} parent=47 // pred_region
        %p281 = scmp.lt.s32.totalorder %s15, 1
        %s282 = scalar_select %p281, %s15, 1
        %s283 = smul.addr %s282, 64
        %s284 = smul.addr %s283, 8
        %s285 = scalar_lea.vmem %s0, %s284
      $region52: #{psa_forward.1} parent=47 // pred_fallthru
        _
    $region48: #{psa_forward.1} parent=5 // pred_fallthru
      _
    %p286 = scmp.le.s32.totalorder 1, %s15
    %p287 = scmp.lt.s32.totalorder %s15, 3
    %p288 = pnand %p286, %p287
    %p289 = pneg %p288
    // Predicated region
    $region53: #{psa_forward.1} parent=5 // pred_check
      _
    $region54: #{psa_forward.1} parent=5 // pred_check_branch
      %291 = sbr.rel (%p288) target = $region56
    $region55: #{psa_forward.1} parent=5 // pred_region
      %s292 = ssub.s32 %s15, 1
      %p293 = scmp.lt.s32.totalorder %s20, 1
      %s294 = scalar_select %p293, %s20, 1
      %s295 = smul.addr %s294, 64
      %s296 = smul.addr %s295, 8
      %s297 = scalar_lea.vmem %s0, %s296
      %p298 = pneg %p41
      %p299 = pneg %p38
      %p300 = pneg %p62
      %p301 = pneg %p59
      %p302 = pneg %p83
      %p303 = pneg %p80
      %p304 = pneg %p104
      %p305 = pneg %p101
      %p306 = pneg %p125
      %p307 = pneg %p122
      %p308 = pneg %p146
      %p309 = pneg %p143
      %p310 = pneg %p167
      %p311 = pneg %p164
      %p312 = pneg %p188
      %p313 = pneg %p185
      %p314 = pneg %p209
      %p315 = pneg %p206
      %p316 = pneg %p235
      %p317 = pneg %p232
      %p318 = scmp.lt.s32.totalorder %s20, 1
      %s319 = scalar_select %p318, %s20, 1
      %s320 = smul.addr %s319, 64
      %s321 = smul.addr %s320, 8
      %s322 = scalar_lea.vmem %s9, %s321
      %p323 = scmp.lt.s32.totalorder %s20, 1
      %s324 = scalar_select %p323, %s20, 1
      %s325 = smul.addr %s324, 64
      %s326 = smul.addr %s325, 8
      %s327 = scalar_lea.vmem %s0, %s326
      %p328 = scmp.lt.s32.totalorder %s20, 1
      %s329 = scalar_select %p328, %s20, 1
      %s330 = smul.addr %s329, 64
      %s331 = smul.addr %s330, 8
      %s332 = scalar_lea.vmem %s9, %s331
      %v335 = vld [vmem:[%s327] sm:$0xff]
      %v336 = vld [vmem:[%s327 + $0x8] sm:$0xff]
      %v337 = vld [vmem:[%s327 + $0x10] sm:$0xff]
      %v338 = vld [vmem:[%s327 + $0x18] sm:$0xff]
      %v339 = vld [vmem:[%s327 + $0x20] sm:$0xff]
      %v340 = vld [vmem:[%s327 + $0x28] sm:$0xff]
      %v341 = vld [vmem:[%s327 + $0x30] sm:$0xff]
      %v342 = vld [vmem:[%s327 + $0x38] sm:$0xff]
      %v343 = vld [vmem:[%s327 + $0x40] sm:$0xff]
      %v344 = vld [vmem:[%s327 + $0x48] sm:$0xff]
      %v345 = vld [vmem:[%s327 + $0x50] sm:$0xff]
      %v346 = vld [vmem:[%s327 + $0x58] sm:$0xff]
      %v347 = vld [vmem:[%s327 + $0x60] sm:$0xff]
      %v348 = vld [vmem:[%s327 + $0x68] sm:$0xff]
      %v349 = vld [vmem:[%s327 + $0x70] sm:$0xff]
      %v350 = vld [vmem:[%s327 + $0x78] sm:$0xff]
      %v351 = vld [vmem:[%s327 + $0x80] sm:$0xff]
      %v352 = vld [vmem:[%s327 + $0x88] sm:$0xff]
      %v353 = vld [vmem:[%s327 + $0x90] sm:$0xff]
      %v354 = vld [vmem:[%s327 + $0x98] sm:$0xff]
      %v355 = vld [vmem:[%s327 + $0xa0] sm:$0xff]
      %v356 = vld [vmem:[%s327 + $0xa8] sm:$0xff]
      %v357 = vld [vmem:[%s327 + $0xb0] sm:$0xff]
      %v358 = vld [vmem:[%s327 + $0xb8] sm:$0xff]
      %v359 = vld [vmem:[%s327 + $0xc0] sm:$0xff]
      %v360 = vld [vmem:[%s327 + $0xc8] sm:$0xff]
      %v361 = vld [vmem:[%s327 + $0xd0] sm:$0xff]
      %v362 = vld [vmem:[%s327 + $0xd8] sm:$0xff]
      %v363 = vld [vmem:[%s327 + $0xe0] sm:$0xff]
      %v364 = vld [vmem:[%s327 + $0xe8] sm:$0xff]
      %v365 = vld [vmem:[%s327 + $0xf0] sm:$0xff]
      %v366 = vld [vmem:[%s327 + $0xf8] sm:$0xff]
      %v367 = vld [vmem:[%s327 + $0x100] sm:$0xff]
      %v368 = vld [vmem:[%s327 + $0x108] sm:$0xff]
      %v369 = vld [vmem:[%s327 + $0x110] sm:$0xff]
      %v370 = vld [vmem:[%s327 + $0x118] sm:$0xff]
      %v371 = vld [vmem:[%s327 + $0x120] sm:$0xff]
      %v372 = vld [vmem:[%s327 + $0x128] sm:$0xff]
      %v373 = vld [vmem:[%s327 + $0x130] sm:$0xff]
      %v374 = vld [vmem:[%s327 + $0x138] sm:$0xff]
      %v375 = vld [vmem:[%s327 + $0x140] sm:$0xff]
      %v376 = vld [vmem:[%s327 + $0x148] sm:$0xff]
      %v377 = vld [vmem:[%s327 + $0x150] sm:$0xff]
      %v378 = vld [vmem:[%s327 + $0x158] sm:$0xff]
      %v379 = vld [vmem:[%s327 + $0x160] sm:$0xff]
      %v380 = vld [vmem:[%s327 + $0x168] sm:$0xff]
      %v381 = vld [vmem:[%s327 + $0x170] sm:$0xff]
      %v382 = vld [vmem:[%s327 + $0x178] sm:$0xff]
      %v383 = vld [vmem:[%s327 + $0x180] sm:$0xff]
      %v384 = vld [vmem:[%s327 + $0x188] sm:$0xff]
      %v385 = vld [vmem:[%s327 + $0x190] sm:$0xff]
      %v386 = vld [vmem:[%s327 + $0x198] sm:$0xff]
      %v387 = vld [vmem:[%s327 + $0x1a0] sm:$0xff]
      %v388 = vld [vmem:[%s327 + $0x1a8] sm:$0xff]
      %v389 = vld [vmem:[%s327 + $0x1b0] sm:$0xff]
      %v390 = vld [vmem:[%s327 + $0x1b8] sm:$0xff]
      %v391 = vld [vmem:[%s327 + $0x1c0] sm:$0xff]
      %v392 = vld [vmem:[%s327 + $0x1c8] sm:$0xff]
      %v393 = vld [vmem:[%s327 + $0x1d0] sm:$0xff]
      %v394 = vld [vmem:[%s327 + $0x1d8] sm:$0xff]
      %v395 = vld [vmem:[%s327 + $0x1e0] sm:$0xff]
      %v396 = vld [vmem:[%s327 + $0x1e8] sm:$0xff]
      %v397 = vld [vmem:[%s327 + $0x1f0] sm:$0xff]
      %v398 = vld [vmem:[%s327 + $0x1f8] sm:$0xff]
      %v399 = vpack.c.bf16 %v337, %v335
      %v400 = vpack.c.bf16 %v338, %v336
      %v401 = vpack.c.bf16 %v341, %v339
      %v402 = vpack.c.bf16 %v342, %v340
      %v403 = vpack.c.bf16 %v345, %v343
      %v404 = vpack.c.bf16 %v346, %v344
      %v405 = vpack.c.bf16 %v349, %v347
      %v406 = vpack.c.bf16 %v350, %v348
      %v407 = vpack.c.bf16 %v353, %v351
      %v408 = vpack.c.bf16 %v354, %v352
      %v409 = vpack.c.bf16 %v357, %v355
      %v410 = vpack.c.bf16 %v358, %v356
      %v411 = vpack.c.bf16 %v361, %v359
      %v412 = vpack.c.bf16 %v362, %v360
      %v413 = vpack.c.bf16 %v365, %v363
      %v414 = vpack.c.bf16 %v366, %v364
      %v415 = vpack.c.bf16 %v369, %v367
      %v416 = vpack.c.bf16 %v370, %v368
      %v417 = vpack.c.bf16 %v373, %v371
      %v418 = vpack.c.bf16 %v374, %v372
      %v419 = vpack.c.bf16 %v377, %v375
      %v420 = vpack.c.bf16 %v378, %v376
      %v421 = vpack.c.bf16 %v381, %v379
      %v422 = vpack.c.bf16 %v382, %v380
      %v423 = vpack.c.bf16 %v385, %v383
      %v424 = vpack.c.bf16 %v386, %v384
      %v425 = vpack.c.bf16 %v389, %v387
      %v426 = vpack.c.bf16 %v390, %v388
      %v427 = vpack.c.bf16 %v393, %v391
      %v428 = vpack.c.bf16 %v394, %v392
      %v429 = vpack.c.bf16 %v397, %v395
      %v430 = vpack.c.bf16 %v398, %v396
      %v431 = vld [vmem:[%s1] sm:$0xff]
      %v432 = vld [vmem:[%s1 + $0x8] sm:$0xff]
      %v433 = vld [vmem:[%s1 + $0x10] sm:$0xff]
      %v434 = vld [vmem:[%s1 + $0x18] sm:$0xff]
      %v435 = vld [vmem:[%s1 + $0x20] sm:$0xff]
      %v436 = vld [vmem:[%s1 + $0x28] sm:$0xff]
      %v437 = vld [vmem:[%s1 + $0x30] sm:$0xff]
      %v438 = vld [vmem:[%s1 + $0x38] sm:$0xff]
      %v439 = vld [vmem:[%s1 + $0x40] sm:$0xff]
      %v440 = vld [vmem:[%s1 + $0x48] sm:$0xff]
      %v441 = vld [vmem:[%s1 + $0x50] sm:$0xff]
      %v442 = vld [vmem:[%s1 + $0x58] sm:$0xff]
      %v443 = vld [vmem:[%s1 + $0x60] sm:$0xff]
      %v444 = vld [vmem:[%s1 + $0x68] sm:$0xff]
      %v445 = vld [vmem:[%s1 + $0x70] sm:$0xff]
      %v446 = vld [vmem:[%s1 + $0x78] sm:$0xff]
      %v447 = vld [vmem:[%s1 + $0x80] sm:$0xff]
      %v448 = vld [vmem:[%s1 + $0x88] sm:$0xff]
      %v467 = vunpack.c.l.b16 %v431
      %v468 = vunpack.c.h.b16 %v431
      %v469 = vunpack.c.l.b16 %v432
      %v470 = vunpack.c.h.b16 %v432
      %v471 = vunpack.c.l.b16 %v433
      %v472 = vunpack.c.h.b16 %v433
      %v473 = vunpack.c.l.b16 %v434
      %v474 = vunpack.c.h.b16 %v434
      %v475 = vunpack.c.l.b16 %v435
      %v476 = vunpack.c.h.b16 %v435
      %v477 = vunpack.c.l.b16 %v436
      %v478 = vunpack.c.h.b16 %v436
      %v479 = vunpack.c.l.b16 %v437
      %v480 = vunpack.c.h.b16 %v437
      %v481 = vunpack.c.l.b16 %v438
      %v482 = vunpack.c.h.b16 %v438
      %v483 = vunpack.c.l.b16 %v439
      %v484 = vunpack.c.h.b16 %v439
      %v485 = vunpack.c.l.b16 %v440
      %v486 = vunpack.c.h.b16 %v440
      %v487 = vunpack.c.l.b16 %v441
      %v488 = vunpack.c.h.b16 %v441
      %v489 = vunpack.c.l.b16 %v442
      %v490 = vunpack.c.h.b16 %v442
      %v491 = vunpack.c.l.b16 %v443
      %v492 = vunpack.c.h.b16 %v443
      %v493 = vunpack.c.l.b16 %v444
      %v494 = vunpack.c.h.b16 %v444
      %v495 = vunpack.c.l.b16 %v445
      %v496 = vunpack.c.h.b16 %v445
      %v497 = vunpack.c.l.b16 %v446
      %v498 = vunpack.c.h.b16 %v446
      %v499 = vunpack.c.l.b16 %v447
      %v500 = vunpack.c.h.b16 %v447
      %v501 = vunpack.c.l.b16 %v448
      %v502 = vunpack.c.h.b16 %v448
      %v503 = vpack.c.b16 %v469, %v467
      %v504 = vpack.c.b16 %v470, %v468
      %v505 = vpack.c.b16 %v473, %v471
      %v506 = vpack.c.b16 %v474, %v472
      %v507 = vpack.c.b16 %v477, %v475
      %v508 = vpack.c.b16 %v478, %v476
      %v509 = vpack.c.b16 %v481, %v479
      %v510 = vpack.c.b16 %v482, %v480
      %v511 = vpack.c.b16 %v485, %v483
      %v512 = vpack.c.b16 %v486, %v484
      %v513 = vpack.c.b16 %v489, %v487
      %v514 = vpack.c.b16 %v490, %v488
      %v515 = vpack.c.b16 %v493, %v491
      %v516 = vpack.c.b16 %v494, %v492
      %v517 = vpack.c.b16 %v497, %v495
      %v518 = vpack.c.b16 %v498, %v496
      %v519 = vpack.c.b16 %v501, %v499
      %v520 = vpack.c.b16 %v502, %v500
      %539 = vmatprep.subr.bf16.mxu0 %v400
      %540 = vmatpush1.bf16.msra.mxu0 %v399
      %541 = vmatprep.subr.bf16.mxu0 %v402
      %542 = vmatpush1.bf16.msra.mxu0 %v401
      %543 = vmatprep.subr.bf16.mxu0 %v404
      %544 = vmatpush1.bf16.msra.mxu0 %v403
      %545 = vmatprep.subr.bf16.mxu0 %v406
      %546 = vmatpush1.bf16.msra.mxu0 %v405
      %547 = vmatprep.subr.bf16.mxu0 %v408
      %548 = vmatpush1.bf16.msra.mxu0 %v407
      %549 = vmatprep.subr.bf16.mxu0 %v410
      %550 = vmatpush1.bf16.msra.mxu0 %v409
      %551 = vmatprep.subr.bf16.mxu0 %v412
      %552 = vmatpush1.bf16.msra.mxu0 %v411
      %553 = vmatprep.subr.bf16.mxu0 %v414
      %554 = vmatpush1.bf16.msra.mxu0 %v413
      %555 = vmatprep.subr.bf16.mxu0 %v416
      %556 = vmatpush1.bf16.msra.mxu0 %v415
      %557 = vmatprep.subr.bf16.mxu0 %v418
      %558 = vmatpush1.bf16.msra.mxu0 %v417
      %559 = vmatprep.subr.bf16.mxu0 %v420
      %560 = vmatpush1.bf16.msra.mxu0 %v419
      %561 = vmatprep.subr.bf16.mxu0 %v422
      %562 = vmatpush1.bf16.msra.mxu0 %v421
      %563 = vmatprep.subr.bf16.mxu0 %v424
      %564 = vmatpush1.bf16.msra.mxu0 %v423
      %565 = vmatprep.subr.bf16.mxu0 %v426
      %566 = vmatpush1.bf16.msra.mxu0 %v425
      %567 = vmatprep.subr.bf16.mxu0 %v428
      %568 = vmatpush1.bf16.msra.mxu0 %v427
      %569 = vmatprep.subr.bf16.mxu0 %v430
      %570 = vmatpush1.bf16.msra.mxu0 %v429
      %571 = vmatprep.mubr.bf16.mxu0 %v504
      %572 = vmatmul.mubr.bf16.gmra.mrb[0].mxu0 %v503
      %v573 = vpop.f32.mrb[0].mxu0
      %v574 = vadd.f32 0.0, %v573
      %v575 = vpop.f32.mrb[0].mxu0
      %v576 = vadd.f32 0.0, %v575
      %v577 = vpop.f32.mrb[0].mxu0
      %v578 = vadd.f32 0.0, %v577
      %v579 = vpop.f32.mrb[0].mxu0
      %v580 = vadd.f32 0.0, %v579
      %581 = vmatprep.mubr.bf16.mxu0 %v506
      %582 = vmatmul.mubr.bf16.gmra.mrb[0].mxu0 %v505
      %v583 = vpop.f32.mrb[0].mxu0
      %v584 = vadd.f32 0.0, %v583
      %v585 = vpop.f32.mrb[0].mxu0
      %v586 = vadd.f32 0.0, %v585
      %v587 = vpop.f32.mrb[0].mxu0
      %v588 = vadd.f32 0.0, %v587
      %v589 = vpop.f32.mrb[0].mxu0
      %v590 = vadd.f32 0.0, %v589
      %591 = vmatprep.mubr.bf16.mxu0 %v508
      %592 = vmatmul.mubr.bf16.gmra.mrb[0].mxu0 %v507
      %v593 = vpop.f32.mrb[0].mxu0
      %v594 = vadd.f32 0.0, %v593
      %v595 = vpop.f32.mrb[0].mxu0
      %v596 = vadd.f32 0.0, %v595
      %v597 = vpop.f32.mrb[0].mxu0
      %v598 = vadd.f32 0.0, %v597
      %v599 = vpop.f32.mrb[0].mxu0
      %v600 = vadd.f32 0.0, %v599
      %601 = vmatprep.mubr.bf16.mxu0 %v510
      %602 = vmatmul.mubr.bf16.gmra.mrb[0].mxu0 %v509
      %v603 = vpop.f32.mrb[0].mxu0
      %v604 = vadd.f32 0.0, %v603
      %v605 = vpop.f32.mrb[0].mxu0
      %v606 = vadd.f32 0.0, %v605
      %v607 = vpop.f32.mrb[0].mxu0
      %v608 = vadd.f32 0.0, %v607
      %v609 = vpop.f32.mrb[0].mxu0
      %v610 = vadd.f32 0.0, %v609
      %611 = vmatprep.mubr.bf16.mxu0 %v512
      %612 = vmatmul.mubr.bf16.gmra.mrb[0].mxu0 %v511
      %v613 = vpop.f32.mrb[0].mxu0
      %v614 = vadd.f32 0.0, %v613
      %v615 = vpop.f32.mrb[0].mxu0
      %v616 = vadd.f32 0.0, %v615
      %v617 = vpop.f32.mrb[0].mxu0
      %v618 = vadd.f32 0.0, %v617
      %v619 = vpop.f32.mrb[0].mxu0
      %v620 = vadd.f32 0.0, %v619
      %621 = vmatprep.mubr.bf16.mxu0 %v514
      %622 = vmatmul.mubr.bf16.gmra.mrb[0].mxu0 %v513
      %v623 = vpop.f32.mrb[0].mxu0
      %v624 = vadd.f32 0.0, %v623
      %v625 = vpop.f32.mrb[0].mxu0
      %v626 = vadd.f32 0.0, %v625
      %v627 = vpop.f32.mrb[0].mxu0
      %v628 = vadd.f32 0.0, %v627
      %v629 = vpop.f32.mrb[0].mxu0
      %v630 = vadd.f32 0.0, %v629
      %631 = vmatprep.mubr.bf16.mxu0 %v516
      %632 = vmatmul.mubr.bf16.gmra.mrb[0].mxu0 %v515
      %v633 = vpop.f32.mrb[0].mxu0
      %v634 = vadd.f32 0.0, %v633
      %v635 = vpop.f32.mrb[0].mxu0
      %v636 = vadd.f32 0.0, %v635
      %v637 = vpop.f32.mrb[0].mxu0
      %v638 = vadd.f32 0.0, %v637
      %v639 = vpop.f32.mrb[0].mxu0
      %v640 = vadd.f32 0.0, %v639
      %641 = vmatprep.mubr.bf16.mxu0 %v518
      %642 = vmatmul.mubr.bf16.gmra.mrb[0].mxu0 %v517
      %v643 = vpop.f32.mrb[0].mxu0
      %v644 = vadd.f32 0.0, %v643
      %v645 = vpop.f32.mrb[0].mxu0
      %v646 = vadd.f32 0.0, %v645
      %v647 = vpop.f32.mrb[0].mxu0
      %v648 = vadd.f32 0.0, %v647
      %v649 = vpop.f32.mrb[0].mxu0
      %v650 = vadd.f32 0.0, %v649
      %651 = vmatprep.mubr.bf16.mxu0 %v520
      %652 = vmatmul.mubr.bf16.gmra.mrb[0].mxu0 %v519
      %v653 = vpop.f32.mrb[0].mxu0
      %v654 = vadd.f32 0.0, %v653
      %v655 = vpop.f32.mrb[0].mxu0
      %v656 = vadd.f32 0.0, %v655
      %v657 = vpop.f32.mrb[0].mxu0
      %v658 = vpop.f32.mrb[0].mxu0
      %659 = vdwg.mxu0
      %vm660 = vcmask 1040384
      %v661 = vsel %vm660, %v654, -inf
      %v662 = vsel %vm660, %v656, -inf
      %v663 = vmax.f32 %v661, %v662
      %664 = vmax.xlane.f32.xlu0 %v663
      %v665 = vpop.xlane.xlu0 %664
      %v666 = vsub.f32 %v654, %v665
      %v667 = vsub.f32 %v656, %v665
      %v668 = vmul.f32 %v666, 1.442695
      %v669 = vpow.pop %v668
      %v670 = vmul.f32 %v667, 1.442695
      %v671 = vpow.pop %v670
      %v672 = vlaneseq
      %v673 = vshrl.u32 %v672, 7
      %v674 = vsub.s32 0, %v673
      %v675 = vrot.slane %v669, %v674
      %v676 = vlaneseq
      %v677 = vshrl.u32 %v676, 7
      %v678 = vsub.s32 0, %v677
      %v679 = vrot.slane %v671, %v678
      %v680 = vmul.f32 %v574, %v675
      %v681 = vmul.f32 %v576, %v679
      %v682 = vmul.f32 %v578, %v675
      %v683 = vmul.f32 %v580, %v679
      %v684 = vmul.f32 %v584, %v675
      %v685 = vmul.f32 %v586, %v679
      %v686 = vmul.f32 %v588, %v675
      %v687 = vmul.f32 %v590, %v679
      %v688 = vmul.f32 %v594, %v675
      %v689 = vmul.f32 %v596, %v679
      %v690 = vmul.f32 %v598, %v675
      %v691 = vmul.f32 %v600, %v679
      %v692 = vmul.f32 %v604, %v675
      %v693 = vmul.f32 %v606, %v679
      %v694 = vmul.f32 %v608, %v675
      %v695 = vmul.f32 %v610, %v679
      %v696 = vmul.f32 %v614, %v675
      %v697 = vmul.f32 %v616, %v679
      %v698 = vmul.f32 %v618, %v675
      %v699 = vmul.f32 %v620, %v679
      %v700 = vmul.f32 %v624, %v675
      %v701 = vmul.f32 %v626, %v679
      %v702 = vmul.f32 %v628, %v675
      %v703 = vmul.f32 %v630, %v679
      %v704 = vmul.f32 %v634, %v675
      %v705 = vmul.f32 %v636, %v679
      %v706 = vmul.f32 %v638, %v675
      %v707 = vmul.f32 %v640, %v679
      %v708 = vmul.f32 %v644, %v675
      %v709 = vmul.f32 %v646, %v679
      %v710 = vmul.f32 %v648, %v675
      %v711 = vmul.f32 %v650, %v679
      %v712 = vadd.f32 %v680, %v681
      %713 = vadd.xlane.f32.xlu0 %v712
      %v714 = vpop.xlane.xlu0 %713
      %v715 = vadd.f32 %v682, %v683
      %716 = vadd.xlane.f32.xlu0 %v715
      %v717 = vpop.xlane.xlu0 %716
      %v718 = vadd.f32 %v684, %v685
      %719 = vadd.xlane.f32.xlu0 %v718
      %v720 = vpop.xlane.xlu0 %719
      %v721 = vadd.f32 %v686, %v687
      %722 = vadd.xlane.f32.xlu0 %v721
      %v723 = vpop.xlane.xlu0 %722
      %v724 = vadd.f32 %v688, %v689
      %725 = vadd.xlane.f32.xlu0 %v724
      %v726 = vpop.xlane.xlu0 %725
      %v727 = vadd.f32 %v690, %v691
      %728 = vadd.xlane.f32.xlu0 %v727
      %v729 = vpop.xlane.xlu0 %728
      %v730 = vadd.f32 %v692, %v693
      %731 = vadd.xlane.f32.xlu0 %v730
      %v732 = vpop.xlane.xlu0 %731
      %v733 = vadd.f32 %v694, %v695
      %734 = vadd.xlane.f32.xlu0 %v733
      %v735 = vpop.xlane.xlu0 %734
      %v736 = vadd.f32 %v696, %v697
      %737 = vadd.xlane.f32.xlu0 %v736
      %v738 = vpop.xlane.xlu0 %737
      %v739 = vadd.f32 %v698, %v699
      %740 = vadd.xlane.f32.xlu0 %v739
      %v741 = vpop.xlane.xlu0 %740
      %v742 = vadd.f32 %v700, %v701
      %743 = vadd.xlane.f32.xlu0 %v742
      %v744 = vpop.xlane.xlu0 %743
      %v745 = vadd.f32 %v702, %v703
      %746 = vadd.xlane.f32.xlu0 %v745
      %v747 = vpop.xlane.xlu0 %746
      %v748 = vadd.f32 %v704, %v705
      %749 = vadd.xlane.f32.xlu0 %v748
      %v750 = vpop.xlane.xlu0 %749
      %v751 = vadd.f32 %v706, %v707
      %752 = vadd.xlane.f32.xlu0 %v751
      %v753 = vpop.xlane.xlu0 %752
      %v754 = vadd.f32 %v708, %v709
      %755 = vadd.xlane.f32.xlu0 %v754
      %v756 = vpop.xlane.xlu0 %755
      %v757 = vadd.f32 %v710, %v711
      %758 = vadd.xlane.f32.xlu0 %v757
      %v759 = vpop.xlane.xlu0 %758
      %v760 = vsel %vm660, %v669, 0.0
      %v761 = vsel %vm660, %v671, 0.0
      %v762 = vadd.f32 %v760, %v761
      %763 = vadd.xlane.f32.xlu0 %v762
      %v764 = vpop.xlane.xlu0 %763
      %v765 = vlaneseq
      %v766 = vshrl.u32 %v765, 7
      %v767 = vsub.s32 0, %v766
      %v768 = vrot.slane %v764, %v767
      %v769 = vrcp.pop %v768
      %v770 = vmul.f32 %v714, %v769
      %v771 = vmul.f32 %v717, %v769
      %v772 = vmul.f32 %v720, %v769
      %v773 = vmul.f32 %v723, %v769
      %v774 = vmul.f32 %v726, %v769
      %v775 = vmul.f32 %v729, %v769
      %v776 = vmul.f32 %v732, %v769
      %v777 = vmul.f32 %v735, %v769
      %v778 = vmul.f32 %v738, %v769
      %v779 = vmul.f32 %v741, %v769
      %v780 = vmul.f32 %v744, %v769
      %v781 = vmul.f32 %v747, %v769
      %v782 = vmul.f32 %v750, %v769
      %v783 = vmul.f32 %v753, %v769
      %v784 = vmul.f32 %v756, %v769
      %v785 = vmul.f32 %v759, %v769
      %v786 = vld [vmem:[%s2] sm:$0xff]
      %v787 = vld [vmem:[%s2 + $0x8] sm:$0xff]
      %v788 = vld [vmem:[%s2 + $0x10] sm:$0xff]
      %v789 = vld [vmem:[%s2 + $0x18] sm:$0xff]
      %v790 = vld [vmem:[%s2 + $0x20] sm:$0xff]
      %v791 = vld [vmem:[%s2 + $0x28] sm:$0xff]
      %v792 = vld [vmem:[%s2 + $0x30] sm:$0xff]
      %v793 = vld [vmem:[%s2 + $0x38] sm:$0xff]
      %v794 = vld [vmem:[%s2 + $0x40] sm:$0xff]
      %v795 = vld [vmem:[%s2 + $0x48] sm:$0xff]
      %v796 = vld [vmem:[%s2 + $0x50] sm:$0xff]
      %v797 = vld [vmem:[%s2 + $0x58] sm:$0xff]
      %v798 = vld [vmem:[%s2 + $0x60] sm:$0xff]
      %v799 = vld [vmem:[%s2 + $0x68] sm:$0xff]
      %v800 = vld [vmem:[%s2 + $0x70] sm:$0xff]
      %v801 = vld [vmem:[%s2 + $0x78] sm:$0xff]
      %v802 = vadd.f32 %v770, %v786
      %v803 = vadd.f32 %v771, %v787
      %v804 = vadd.f32 %v772, %v788
      %v805 = vadd.f32 %v773, %v789
      %v806 = vadd.f32 %v774, %v790
      %v807 = vadd.f32 %v775, %v791
      %v808 = vadd.f32 %v776, %v792
      %v809 = vadd.f32 %v777, %v793
      %v810 = vadd.f32 %v778, %v794
      %v811 = vadd.f32 %v779, %v795
      %v812 = vadd.f32 %v780, %v796
      %v813 = vadd.f32 %v781, %v797
      %v814 = vadd.f32 %v782, %v798
      %v815 = vadd.f32 %v783, %v799
      %v816 = vadd.f32 %v784, %v800
      %v817 = vadd.f32 %v785, %v801
      %v818 = vld [vmem:[%s5] sm:$0xf]
      %v819 = vld [vmem:[%s5 + $0x4] sm:$0xf]
      %v820 = vld [vmem:[%s5 + $0x8] sm:$0xf]
      %v821 = vld [vmem:[%s5 + $0xc] sm:$0xf]
      %v822 = vld [vmem:[%s5 + $0x10] sm:$0xf]
      %v823 = vld [vmem:[%s5 + $0x14] sm:$0xf]
      %v824 = vld [vmem:[%s5 + $0x18] sm:$0xf]
      %v825 = vld [vmem:[%s5 + $0x1c] sm:$0xf]
      %v826 = vld [vmem:[%s5 + $0x20] sm:$0xf]
      %v827 = vld [vmem:[%s5 + $0x24] sm:$0xf]
      %v828 = vld [vmem:[%s5 + $0x28] sm:$0xf]
      %v829 = vld [vmem:[%s5 + $0x2c] sm:$0xf]
      %v830 = vld [vmem:[%s5 + $0x30] sm:$0xf]
      %v831 = vld [vmem:[%s5 + $0x34] sm:$0xf]
      %v832 = vld [vmem:[%s5 + $0x38] sm:$0xf]
      %v833 = vld [vmem:[%s5 + $0x3c] sm:$0xf]
      %v834 = vld [vmem:[%s5 + $0x40] sm:$0xf]
      %v835 = vld [vmem:[%s5 + $0x44] sm:$0xf]
      %v836 = vld [vmem:[%s5 + $0x48] sm:$0xf]
      %v837 = vld [vmem:[%s5 + $0x4c] sm:$0xf]
      %v838 = vld [vmem:[%s5 + $0x50] sm:$0xf]
      %v839 = vld [vmem:[%s5 + $0x54] sm:$0xf]
      %v840 = vld [vmem:[%s5 + $0x58] sm:$0xf]
      %v841 = vld [vmem:[%s5 + $0x5c] sm:$0xf]
      %v842 = vld [vmem:[%s5 + $0x60] sm:$0xf]
      %v843 = vld [vmem:[%s5 + $0x64] sm:$0xf]
      %v844 = vld [vmem:[%s5 + $0x68] sm:$0xf]
      %v845 = vld [vmem:[%s5 + $0x6c] sm:$0xf]
      %v846 = vld [vmem:[%s5 + $0x70] sm:$0xf]
      %v847 = vld [vmem:[%s5 + $0x74] sm:$0xf]
      %v848 = vld [vmem:[%s5 + $0x78] sm:$0xf]
      %v849 = vld [vmem:[%s5 + $0x7c] sm:$0xf]
      %v850 = vpack.c.bf16 %v803, %v802
      %v851 = vpack.c.bf16 %v805, %v804
      %v852 = vpack.c.bf16 %v807, %v806
      %v853 = vpack.c.bf16 %v809, %v808
      %v854 = vpack.c.bf16 %v811, %v810
      %v855 = vpack.c.bf16 %v813, %v812
      %v856 = vpack.c.bf16 %v815, %v814
      %v857 = vpack.c.bf16 %v817, %v816
      %v858 = vld [vmem:[%s6] sm:$0xff]
      %v859 = vld [vmem:[%s6 + $0x8] sm:$0xff]
      %v860 = vld [vmem:[%s6 + $0x10] sm:$0xff]
      %v861 = vld [vmem:[%s6 + $0x18] sm:$0xff]
      %v862 = vld [vmem:[%s6 + $0x20] sm:$0xff]
      %v863 = vld [vmem:[%s6 + $0x28] sm:$0xff]
      %v864 = vld [vmem:[%s6 + $0x30] sm:$0xff]
      %v865 = vld [vmem:[%s6 + $0x38] sm:$0xff]
      %v866 = vld [vmem:[%s6 + $0x40] sm:$0xff]
      %v867 = vld [vmem:[%s6 + $0x48] sm:$0xff]
      %v868 = vld [vmem:[%s6 + $0x50] sm:$0xff]
      %v869 = vld [vmem:[%s6 + $0x58] sm:$0xff]
      %v870 = vld [vmem:[%s6 + $0x60] sm:$0xff]
      %v871 = vld [vmem:[%s6 + $0x68] sm:$0xff]
      %v872 = vld [vmem:[%s6 + $0x70] sm:$0xff]
      %v873 = vld [vmem:[%s6 + $0x78] sm:$0xff]
      %v874 = vld [vmem:[%s6 + $0x80] sm:$0xff]
      %v875 = vld [vmem:[%s6 + $0x88] sm:$0xff]
      %v876 = vld [vmem:[%s6 + $0x90] sm:$0xff]
      %v877 = vld [vmem:[%s6 + $0x98] sm:$0xff]
      %v878 = vld [vmem:[%s6 + $0xa0] sm:$0xff]
      %v879 = vld [vmem:[%s6 + $0xa8] sm:$0xff]
      %v880 = vld [vmem:[%s6 + $0xb0] sm:$0xff]
      %v881 = vld [vmem:[%s6 + $0xb8] sm:$0xff]
      %v882 = vld [vmem:[%s6 + $0xc0] sm:$0xff]
      %v883 = vld [vmem:[%s6 + $0xc8] sm:$0xff]
      %v884 = vld [vmem:[%s6 + $0xd0] sm:$0xff]
      %v885 = vld [vmem:[%s6 + $0xd8] sm:$0xff]
      %v886 = vld [vmem:[%s6 + $0xe0] sm:$0xff]
      %v887 = vld [vmem:[%s6 + $0xe8] sm:$0xff]
      %v888 = vld [vmem:[%s6 + $0xf0] sm:$0xff]
      %v889 = vld [vmem:[%s6 + $0xf8] sm:$0xff]
      %v922 = vunpack.c.l.b16 %v818
      %v923 = vunpack.c.l.b16 %v819
      %v924 = vunpack.c.l.b16 %v820
      %v925 = vunpack.c.l.b16 %v821
      %v926 = vunpack.c.l.b16 %v822
      %v927 = vunpack.c.l.b16 %v823
      %v928 = vunpack.c.l.b16 %v824
      %v929 = vunpack.c.l.b16 %v825
      %v930 = vunpack.c.l.b16 %v826
      %v931 = vunpack.c.l.b16 %v827
      %v932 = vunpack.c.l.b16 %v828
      %v933 = vunpack.c.l.b16 %v829
      %v934 = vunpack.c.l.b16 %v830
      %v935 = vunpack.c.l.b16 %v831
      %v936 = vunpack.c.l.b16 %v832
      %v937 = vunpack.c.l.b16 %v833
      %v938 = vunpack.c.l.b16 %v834
      %v939 = vunpack.c.l.b16 %v835
      %v940 = vunpack.c.l.b16 %v836
      %v941 = vunpack.c.l.b16 %v837
      %v942 = vunpack.c.l.b16 %v838
      %v943 = vunpack.c.l.b16 %v839
      %v944 = vunpack.c.l.b16 %v840
      %v945 = vunpack.c.l.b16 %v841
      %v946 = vunpack.c.l.b16 %v842
      %v947 = vunpack.c.l.b16 %v843
      %v948 = vunpack.c.l.b16 %v844
      %v949 = vunpack.c.l.b16 %v845
      %v950 = vunpack.c.l.b16 %v846
      %v951 = vunpack.c.l.b16 %v847
      %v952 = vunpack.c.l.b16 %v848
      %v953 = vunpack.c.l.b16 %v849
      %v954 = vpack.c.b16 %v923, %v922
      %v955 = vpack.c.b16 %v925, %v924
      %v956 = vpack.c.b16 %v927, %v926
      %v957 = vpack.c.b16 %v929, %v928
      %v958 = vpack.c.b16 %v931, %v930
      %v959 = vpack.c.b16 %v933, %v932
      %v960 = vpack.c.b16 %v935, %v934
      %v961 = vpack.c.b16 %v937, %v936
      %v962 = vpack.c.b16 %v939, %v938
      %v963 = vpack.c.b16 %v941, %v940
      %v964 = vpack.c.b16 %v943, %v942
      %v965 = vpack.c.b16 %v945, %v944
      %v966 = vpack.c.b16 %v947, %v946
      %v967 = vpack.c.b16 %v949, %v948
      %v968 = vpack.c.b16 %v951, %v950
      %v969 = vpack.c.b16 %v953, %v952
      %986 = vmatprep.subr.bf16.mxu0 0
      %987 = vmatpush1.bf16.msra.mxu0 %v850
      %988 = vmatprep.subr.bf16.mxu0 0
      %989 = vmatpush1.bf16.msra.mxu0 %v851
      %990 = vmatprep.subr.bf16.mxu0 0
      %991 = vmatpush1.bf16.msra.mxu0 %v852
      %992 = vmatprep.subr.bf16.mxu0 0
      %993 = vmatpush1.bf16.msra.mxu0 %v853
      %994 = vmatprep.subr.bf16.mxu0 0
      %995 = vmatpush1.bf16.msra.mxu0 %v854
      %996 = vmatprep.subr.bf16.mxu0 0
      %997 = vmatpush1.bf16.msra.mxu0 %v855
      %998 = vmatprep.subr.bf16.mxu0 0
      %999 = vmatpush1.bf16.msra.mxu0 %v856
      %1000 = vmatprep.subr.bf16.mxu0 0
      %1001 = vmatpush1.bf16.msra.mxu0 %v857
      %1002 = vmatprep.subr.bf16.mxu0 0
      %1003 = vmatpush1.bf16.msra.mxu0 0
      %1004 = vmatprep.subr.bf16.mxu0 0
      %1005 = vmatpush1.bf16.msra.mxu0 0
      %1006 = vmatprep.subr.bf16.mxu0 0
      %1007 = vmatpush1.bf16.msra.mxu0 0
      %1008 = vmatprep.subr.bf16.mxu0 0
      %1009 = vmatpush1.bf16.msra.mxu0 0
      %1010 = vmatprep.subr.bf16.mxu0 0
      %1011 = vmatpush1.bf16.msra.mxu0 0
      %1012 = vmatprep.subr.bf16.mxu0 0
      %1013 = vmatpush1.bf16.msra.mxu0 0
      %1014 = vmatprep.subr.bf16.mxu0 0
      %1015 = vmatpush1.bf16.msra.mxu0 0
      %1016 = vmatprep.subr.bf16.mxu0 0
      %1017 = vmatpush1.bf16.msra.mxu0 0
      %1018 = vmatprep.mubr.bf16.mxu0 0
      %1019 = vmatmul.mubr.bf16.gmra.mrb[0].mxu0 %v954
      %v1020 = vpop.f32.mrb[0].mxu0
      %v1021 = vadd.f32 %v858, %v1020
      %v1022 = vpop.f32.mrb[0].mxu0
      %v1023 = vpop.f32.mrb[0].mxu0
      %v1024 = vadd.f32 %v859, %v1023
      %v1025 = vpop.f32.mrb[0].mxu0
      %1026 = vmatprep.mubr.bf16.mxu0 0
      %1027 = vmatmul.mubr.bf16.gmra.mrb[0].mxu0 %v955
      %v1028 = vpop.f32.mrb[0].mxu0
      %v1029 = vadd.f32 %v860, %v1028
      %v1030 = vpop.f32.mrb[0].mxu0
      %v1031 = vpop.f32.mrb[0].mxu0
      %v1032 = vadd.f32 %v861, %v1031
      %v1033 = vpop.f32.mrb[0].mxu0
      %1034 = vmatprep.mubr.bf16.mxu0 0
      %1035 = vmatmul.mubr.bf16.gmra.mrb[0].mxu0 %v956
      %v1036 = vpop.f32.mrb[0].mxu0
      %v1037 = vadd.f32 %v862, %v1036
      %v1038 = vpop.f32.mrb[0].mxu0
      %v1039 = vpop.f32.mrb[0].mxu0
      %v1040 = vadd.f32 %v863, %v1039
      %v1041 = vpop.f32.mrb[0].mxu0
      %1042 = vmatprep.mubr.bf16.mxu0 0
      %1043 = vmatmul.mubr.bf16.gmra.mrb[0].mxu0 %v957
      %v1044 = vpop.f32.mrb[0].mxu0
      %v1045 = vadd.f32 %v864, %v1044
      %v1046 = vpop.f32.mrb[0].mxu0
      %v1047 = vpop.f32.mrb[0].mxu0
      %v1048 = vadd.f32 %v865, %v1047
      %v1049 = vpop.f32.mrb[0].mxu0
      %1050 = vmatprep.mubr.bf16.mxu0 0
      %1051 = vmatmul.mubr.bf16.gmra.mrb[0].mxu0 %v958
      %v1052 = vpop.f32.mrb[0].mxu0
      %v1053 = vadd.f32 %v866, %v1052
      %v1054 = vpop.f32.mrb[0].mxu0
      %v1055 = vpop.f32.mrb[0].mxu0
      %v1056 = vadd.f32 %v867, %v1055
      %v1057 = vpop.f32.mrb[0].mxu0
      %1058 = vmatprep.mubr.bf16.mxu0 0
      %1059 = vmatmul.mubr.bf16.gmra.mrb[0].mxu0 %v959
      %v1060 = vpop.f32.mrb[0].mxu0
      %v1061 = vadd.f32 %v868, %v1060
      %v1062 = vpop.f32.mrb[0].mxu0
      %v1063 = vpop.f32.mrb[0].mxu0
      %v1064 = vadd.f32 %v869, %v1063
      %v1065 = vpop.f32.mrb[0].mxu0
      %1066 = vmatprep.mubr.bf16.mxu0 0
      %1067 = vmatmul.mubr.bf16.gmra.mrb[0].mxu0 %v960
      %v1068 = vpop.f32.mrb[0].mxu0
      %v1069 = vadd.f32 %v870, %v1068
      %v1070 = vpop.f32.mrb[0].mxu0
      %v1071 = vpop.f32.mrb[0].mxu0
      %v1072 = vadd.f32 %v871, %v1071
      %v1073 = vpop.f32.mrb[0].mxu0
      %1074 = vmatprep.mubr.bf16.mxu0 0
      %1075 = vmatmul.mubr.bf16.gmra.mrb[0].mxu0 %v961
      %v1076 = vpop.f32.mrb[0].mxu0
      %v1077 = vadd.f32 %v872, %v1076
      %v1078 = vpop.f32.mrb[0].mxu0
      %v1079 = vpop.f32.mrb[0].mxu0
      %v1080 = vadd.f32 %v873, %v1079
      %v1081 = vpop.f32.mrb[0].mxu0
      %1082 = vmatprep.mubr.bf16.mxu0 0
      %1083 = vmatmul.mubr.bf16.gmra.mrb[0].mxu0 %v962
      %v1084 = vpop.f32.mrb[0].mxu0
      %v1085 = vadd.f32 %v874, %v1084
      %v1086 = vpop.f32.mrb[0].mxu0
      %v1087 = vpop.f32.mrb[0].mxu0
      %v1088 = vadd.f32 %v875, %v1087
      %v1089 = vpop.f32.mrb[0].mxu0
      %1090 = vmatprep.mubr.bf16.mxu0 0
      %1091 = vmatmul.mubr.bf16.gmra.mrb[0].mxu0 %v963
      %v1092 = vpop.f32.mrb[0].mxu0
      %v1093 = vadd.f32 %v876, %v1092
      %v1094 = vpop.f32.mrb[0].mxu0
      %v1095 = vpop.f32.mrb[0].mxu0
      %v1096 = vadd.f32 %v877, %v1095
      %v1097 = vpop.f32.mrb[0].mxu0
      %1098 = vmatprep.mubr.bf16.mxu0 0
      %1099 = vmatmul.mubr.bf16.gmra.mrb[0].mxu0 %v964
      %v1100 = vpop.f32.mrb[0].mxu0
      %v1101 = vadd.f32 %v878, %v1100
      %v1102 = vpop.f32.mrb[0].mxu0
      %v1103 = vpop.f32.mrb[0].mxu0
      %v1104 = vadd.f32 %v879, %v1103
      %v1105 = vpop.f32.mrb[0].mxu0
      %1106 = vmatprep.mubr.bf16.mxu0 0
      %1107 = vmatmul.mubr.bf16.gmra.mrb[0].mxu0 %v965
      %v1108 = vpop.f32.mrb[0].mxu0
      %v1109 = vadd.f32 %v880, %v1108
      %v1110 = vpop.f32.mrb[0].mxu0
      %v1111 = vpop.f32.mrb[0].mxu0
      %v1112 = vadd.f32 %v881, %v1111
      %v1113 = vpop.f32.mrb[0].mxu0
      %1114 = vmatprep.mubr.bf16.mxu0 0
      %1115 = vmatmul.mubr.bf16.gmra.mrb[0].mxu0 %v966
      %v1116 = vpop.f32.mrb[0].mxu0
      %v1117 = vadd.f32 %v882, %v1116
      %v1118 = vpop.f32.mrb[0].mxu0
      %v1119 = vpop.f32.mrb[0].mxu0
      %v1120 = vadd.f32 %v883, %v1119
      %v1121 = vpop.f32.mrb[0].mxu0
      %1122 = vmatprep.mubr.bf16.mxu0 0
      %1123 = vmatmul.mubr.bf16.gmra.mrb[0].mxu0 %v967
      %v1124 = vpop.f32.mrb[0].mxu0
      %v1125 = vadd.f32 %v884, %v1124
      %v1126 = vpop.f32.mrb[0].mxu0
      %v1127 = vpop.f32.mrb[0].mxu0
      %v1128 = vadd.f32 %v885, %v1127
      %v1129 = vpop.f32.mrb[0].mxu0
      %1130 = vmatprep.mubr.bf16.mxu0 0
      %1131 = vmatmul.mubr.bf16.gmra.mrb[0].mxu0 %v968
      %v1132 = vpop.f32.mrb[0].mxu0
      %v1133 = vadd.f32 %v886, %v1132
      %v1134 = vpop.f32.mrb[0].mxu0
      %v1135 = vpop.f32.mrb[0].mxu0
      %v1136 = vadd.f32 %v887, %v1135
      %v1137 = vpop.f32.mrb[0].mxu0
      %1138 = vmatprep.mubr.bf16.mxu0 0
      %1139 = vmatmul.mubr.bf16.gmra.mrb[0].mxu0 %v969
      %v1140 = vpop.f32.mrb[0].mxu0
      %v1141 = vadd.f32 %v888, %v1140
      %v1142 = vpop.f32.mrb[0].mxu0
      %v1143 = vpop.f32.mrb[0].mxu0
      %v1144 = vadd.f32 %v889, %v1143
      %v1145 = vpop.f32.mrb[0].mxu0
      %1146 = vdwg.mxu0
      %vm1147 = vcmask 7168
      %v1148 = vsel %vm1147, %v1021, 0.0
      %v1149 = vsel %vm1147, %v1024, 0.0
      %v1150 = vadd.f32 %v1148, %v1149
      %v1151 = vsel %vm1147, %v1029, 0.0
      %v1152 = vadd.f32 %v1150, %v1151
      %v1153 = vsel %vm1147, %v1032, 0.0
      %v1154 = vadd.f32 %v1152, %v1153
      %v1155 = vsel %vm1147, %v1037, 0.0
      %v1156 = vadd.f32 %v1154, %v1155
      %v1157 = vsel %vm1147, %v1040, 0.0
      %v1158 = vadd.f32 %v1156, %v1157
      %v1159 = vsel %vm1147, %v1045, 0.0
      %v1160 = vadd.f32 %v1158, %v1159
      %v1161 = vsel %vm1147, %v1048, 0.0
      %v1162 = vadd.f32 %v1160, %v1161
      %v1163 = vsel %vm1147, %v1053, 0.0
      %v1164 = vadd.f32 %v1162, %v1163
      %v1165 = vsel %vm1147, %v1056, 0.0
      %v1166 = vadd.f32 %v1164, %v1165
      %v1167 = vsel %vm1147, %v1061, 0.0
      %v1168 = vadd.f32 %v1166, %v1167
      %v1169 = vsel %vm1147, %v1064, 0.0
      %v1170 = vadd.f32 %v1168, %v1169
      %v1171 = vsel %vm1147, %v1069, 0.0
      %v1172 = vadd.f32 %v1170, %v1171
      %v1173 = vsel %vm1147, %v1072, 0.0
      %v1174 = vadd.f32 %v1172, %v1173
      %v1175 = vsel %vm1147, %v1077, 0.0
      %v1176 = vadd.f32 %v1174, %v1175
      %v1177 = vsel %vm1147, %v1080, 0.0
      %v1178 = vadd.f32 %v1176, %v1177
      %v1179 = vsel %vm1147, %v1085, 0.0
      %v1180 = vadd.f32 %v1178, %v1179
      %v1181 = vsel %vm1147, %v1088, 0.0
      %v1182 = vadd.f32 %v1180, %v1181
      %v1183 = vsel %vm1147, %v1093, 0.0
      %v1184 = vadd.f32 %v1182, %v1183
      %v1185 = vsel %vm1147, %v1096, 0.0
      %v1186 = vadd.f32 %v1184, %v1185
      %v1187 = vsel %vm1147, %v1101, 0.0
      %v1188 = vadd.f32 %v1186, %v1187
      %v1189 = vsel %vm1147, %v1104, 0.0
      %v1190 = vadd.f32 %v1188, %v1189
      %v1191 = vsel %vm1147, %v1109, 0.0
      %v1192 = vadd.f32 %v1190, %v1191
      %v1193 = vsel %vm1147, %v1112, 0.0
      %v1194 = vadd.f32 %v1192, %v1193
      %v1195 = vsel %vm1147, %v1117, 0.0
      %v1196 = vadd.f32 %v1194, %v1195
      %v1197 = vsel %vm1147, %v1120, 0.0
      %v1198 = vadd.f32 %v1196, %v1197
      %v1199 = vsel %vm1147, %v1125, 0.0
      %v1200 = vadd.f32 %v1198, %v1199
      %v1201 = vsel %vm1147, %v1128, 0.0
      %v1202 = vadd.f32 %v1200, %v1201
      %v1203 = vsel %vm1147, %v1133, 0.0
      %v1204 = vadd.f32 %v1202, %v1203
      %v1205 = vsel %vm1147, %v1136, 0.0
      %v1206 = vadd.f32 %v1204, %v1205
      %v1207 = vsel %vm1147, %v1141, 0.0
      %v1208 = vadd.f32 %v1206, %v1207
      %v1209 = vsel %vm1147, %v1144, 0.0
      %v1210 = vadd.f32 %v1208, %v1209
      %v1211 = vrot.slane %v1210, 4
      %v1212 = vadd.f32 %v1210, %v1211
      %v1213 = vrot.slane %v1212, 2
      %v1214 = vadd.f32 %v1212, %v1213
      %v1215 = vrot.slane %v1214, 1
      %v1216 = vadd.f32 %v1214, %v1215
      %v1217 = vrcp.pop 256.0
      %v1218 = vmul.f32 %v1216, %v1217
      %v1219 = vsub.f32 %v1021, %v1218
      %v1220 = vsub.f32 %v1024, %v1218
      %v1221 = vsub.f32 %v1029, %v1218
      %v1222 = vsub.f32 %v1032, %v1218
      %v1223 = vsub.f32 %v1037, %v1218
      %v1224 = vsub.f32 %v1040, %v1218
      %v1225 = vsub.f32 %v1045, %v1218
      %v1226 = vsub.f32 %v1048, %v1218
      %v1227 = vsub.f32 %v1053, %v1218
      %v1228 = vsub.f32 %v1056, %v1218
      %v1229 = vsub.f32 %v1061, %v1218
      %v1230 = vsub.f32 %v1064, %v1218
      %v1231 = vsub.f32 %v1069, %v1218
      %v1232 = vsub.f32 %v1072, %v1218
      %v1233 = vsub.f32 %v1077, %v1218
      %v1234 = vsub.f32 %v1080, %v1218
      %v1235 = vsub.f32 %v1085, %v1218
      %v1236 = vsub.f32 %v1088, %v1218
      %v1237 = vsub.f32 %v1093, %v1218
      %v1238 = vsub.f32 %v1096, %v1218
      %v1239 = vsub.f32 %v1101, %v1218
      %v1240 = vsub.f32 %v1104, %v1218
      %v1241 = vsub.f32 %v1109, %v1218
      %v1242 = vsub.f32 %v1112, %v1218
      %v1243 = vsub.f32 %v1117, %v1218
      %v1244 = vsub.f32 %v1120, %v1218
      %v1245 = vsub.f32 %v1125, %v1218
      %v1246 = vsub.f32 %v1128, %v1218
      %v1247 = vsub.f32 %v1133, %v1218
      %v1248 = vsub.f32 %v1136, %v1218
      %v1249 = vsub.f32 %v1141, %v1218
      %v1250 = vsub.f32 %v1144, %v1218
      %v1251 = vmul.f32 %v1219, %v1219
      %v1252 = vmul.f32 %v1220, %v1220
      %v1253 = vmul.f32 %v1221, %v1221
      %v1254 = vmul.f32 %v1222, %v1222
      %v1255 = vmul.f32 %v1223, %v1223
      %v1256 = vmul.f32 %v1224, %v1224
      %v1257 = vmul.f32 %v1225, %v1225
      %v1258 = vmul.f32 %v1226, %v1226
      %v1259 = vmul.f32 %v1227, %v1227
      %v1260 = vmul.f32 %v1228, %v1228
      %v1261 = vmul.f32 %v1229, %v1229
      %v1262 = vmul.f32 %v1230, %v1230
      %v1263 = vmul.f32 %v1231, %v1231
      %v1264 = vmul.f32 %v1232, %v1232
      %v1265 = vmul.f32 %v1233, %v1233
      %v1266 = vmul.f32 %v1234, %v1234
      %v1267 = vmul.f32 %v1235, %v1235
      %v1268 = vmul.f32 %v1236, %v1236
      %v1269 = vmul.f32 %v1237, %v1237
      %v1270 = vmul.f32 %v1238, %v1238
      %v1271 = vmul.f32 %v1239, %v1239
      %v1272 = vmul.f32 %v1240, %v1240
      %v1273 = vmul.f32 %v1241, %v1241
      %v1274 = vmul.f32 %v1242, %v1242
      %v1275 = vmul.f32 %v1243, %v1243
      %v1276 = vmul.f32 %v1244, %v1244
      %v1277 = vmul.f32 %v1245, %v1245
      %v1278 = vmul.f32 %v1246, %v1246
      %v1279 = vmul.f32 %v1247, %v1247
      %v1280 = vmul.f32 %v1248, %v1248
      %v1281 = vmul.f32 %v1249, %v1249
      %v1282 = vmul.f32 %v1250, %v1250
      %v1283 = vsel %vm1147, %v1251, 0.0
      %v1284 = vsel %vm1147, %v1252, 0.0
      %v1285 = vadd.f32 %v1283, %v1284
      %v1286 = vsel %vm1147, %v1253, 0.0
      %v1287 = vadd.f32 %v1285, %v1286
      %v1288 = vsel %vm1147, %v1254, 0.0
      %v1289 = vadd.f32 %v1287, %v1288
      %v1290 = vsel %vm1147, %v1255, 0.0
      %v1291 = vadd.f32 %v1289, %v1290
      %v1292 = vsel %vm1147, %v1256, 0.0
      %v1293 = vadd.f32 %v1291, %v1292
      %v1294 = vsel %vm1147, %v1257, 0.0
      %v1295 = vadd.f32 %v1293, %v1294
      %v1296 = vsel %vm1147, %v1258, 0.0
      %v1297 = vadd.f32 %v1295, %v1296
      %v1298 = vsel %vm1147, %v1259, 0.0
      %v1299 = vadd.f32 %v1297, %v1298
      %v1300 = vsel %vm1147, %v1260, 0.0
      %v1301 = vadd.f32 %v1299, %v1300
      %v1302 = vsel %vm1147, %v1261, 0.0
      %v1303 = vadd.f32 %v1301, %v1302
      %v1304 = vsel %vm1147, %v1262, 0.0
      %v1305 = vadd.f32 %v1303, %v1304
      %v1306 = vsel %vm1147, %v1263, 0.0
      %v1307 = vadd.f32 %v1305, %v1306
      %v1308 = vsel %vm1147, %v1264, 0.0
      %v1309 = vadd.f32 %v1307, %v1308
      %v1310 = vsel %vm1147, %v1265, 0.0
      %v1311 = vadd.f32 %v1309, %v1310
      %v1312 = vsel %vm1147, %v1266, 0.0
      %v1313 = vadd.f32 %v1311, %v1312
      %v1314 = vsel %vm1147, %v1267, 0.0
      %v1315 = vadd.f32 %v1313, %v1314
      %v1316 = vsel %vm1147, %v1268, 0.0
      %v1317 = vadd.f32 %v1315, %v1316
      %v1318 = vsel %vm1147, %v1269, 0.0
      %v1319 = vadd.f32 %v1317, %v1318
      %v1320 = vsel %vm1147, %v1270, 0.0
      %v1321 = vadd.f32 %v1319, %v1320
      %v1322 = vsel %vm1147, %v1271, 0.0
      %v1323 = vadd.f32 %v1321, %v1322
      %v1324 = vsel %vm1147, %v1272, 0.0
      %v1325 = vadd.f32 %v1323, %v1324
      %v1326 = vsel %vm1147, %v1273, 0.0
      %v1327 = vadd.f32 %v1325, %v1326
      %v1328 = vsel %vm1147, %v1274, 0.0
      %v1329 = vadd.f32 %v1327, %v1328
      %v1330 = vsel %vm1147, %v1275, 0.0
      %v1331 = vadd.f32 %v1329, %v1330
      %v1332 = vsel %vm1147, %v1276, 0.0
      %v1333 = vadd.f32 %v1331, %v1332
      %v1334 = vsel %vm1147, %v1277, 0.0
      %v1335 = vadd.f32 %v1333, %v1334
      %v1336 = vsel %vm1147, %v1278, 0.0
      %v1337 = vadd.f32 %v1335, %v1336
      %v1338 = vsel %vm1147, %v1279, 0.0
      %v1339 = vadd.f32 %v1337, %v1338
      %v1340 = vsel %vm1147, %v1280, 0.0
      %v1341 = vadd.f32 %v1339, %v1340
      %v1342 = vsel %vm1147, %v1281, 0.0
      %v1343 = vadd.f32 %v1341, %v1342
      %v1344 = vsel %vm1147, %v1282, 0.0
      %v1345 = vadd.f32 %v1343, %v1344
      %v1346 = vrot.slane %v1345, 4
      %v1347 = vadd.f32 %v1345, %v1346
      %v1348 = vrot.slane %v1347, 2
      %v1349 = vadd.f32 %v1347, %v1348
      %v1350 = vrot.slane %v1349, 1
      %v1351 = vadd.f32 %v1349, %v1350
      %v1352 = vmul.f32 %v1351, %v1217
      %v1353 = vadd.f32 %v1352, 1e-05
      %v1354 = vrsqrt.pop %v1353
      %v1355 = vmul.f32 %v1219, %v1354
      %v1356 = vmul.f32 %v1220, %v1354
      %v1357 = vmul.f32 %v1221, %v1354
      %v1358 = vmul.f32 %v1222, %v1354
      %v1359 = vmul.f32 %v1223, %v1354
      %v1360 = vmul.f32 %v1224, %v1354
      %v1361 = vmul.f32 %v1225, %v1354
      %v1362 = vmul.f32 %v1226, %v1354
      %v1363 = vmul.f32 %v1227, %v1354
      %v1364 = vmul.f32 %v1228, %v1354
      %v1365 = vmul.f32 %v1229, %v1354
      %v1366 = vmul.f32 %v1230, %v1354
      %v1367 = vmul.f32 %v1231, %v1354
      %v1368 = vmul.f32 %v1232, %v1354
      %v1369 = vmul.f32 %v1233, %v1354
      %v1370 = vmul.f32 %v1234, %v1354
      %v1371 = vmul.f32 %v1235, %v1354
      %v1372 = vmul.f32 %v1236, %v1354
      %v1373 = vmul.f32 %v1237, %v1354
      %v1374 = vmul.f32 %v1238, %v1354
      %v1375 = vmul.f32 %v1239, %v1354
      %v1376 = vmul.f32 %v1240, %v1354
      %v1377 = vmul.f32 %v1241, %v1354
      %v1378 = vmul.f32 %v1242, %v1354
      %v1379 = vmul.f32 %v1243, %v1354
      %v1380 = vmul.f32 %v1244, %v1354
      %v1381 = vmul.f32 %v1245, %v1354
      %v1382 = vmul.f32 %v1246, %v1354
      %v1383 = vmul.f32 %v1247, %v1354
      %v1384 = vmul.f32 %v1248, %v1354
      %v1385 = vmul.f32 %v1249, %v1354
      %v1386 = vmul.f32 %v1250, %v1354
      %v1387 = vld [vmem:[%s7] sm:$0xff]
      %v1388 = vld [vmem:[%s7 + $0x8] sm:$0xff]
      %v1389 = vld [vmem:[%s7 + $0x10] sm:$0xff]
      %v1390 = vld [vmem:[%s7 + $0x18] sm:$0xff]
      %v1391 = vld [vmem:[%s7 + $0x20] sm:$0xff]
      %v1392 = vld [vmem:[%s7 + $0x28] sm:$0xff]
      %v1393 = vld [vmem:[%s7 + $0x30] sm:$0xff]
      %v1394 = vld [vmem:[%s7 + $0x38] sm:$0xff]
      %v1395 = vld [vmem:[%s7 + $0x40] sm:$0xff]
      %v1396 = vld [vmem:[%s7 + $0x48] sm:$0xff]
      %v1397 = vld [vmem:[%s7 + $0x50] sm:$0xff]
      %v1398 = vld [vmem:[%s7 + $0x58] sm:$0xff]
      %v1399 = vld [vmem:[%s7 + $0x60] sm:$0xff]
      %v1400 = vld [vmem:[%s7 + $0x68] sm:$0xff]
      %v1401 = vld [vmem:[%s7 + $0x70] sm:$0xff]
      %v1402 = vld [vmem:[%s7 + $0x78] sm:$0xff]
      %v1403 = vld [vmem:[%s7 + $0x80] sm:$0xff]
      %v1404 = vld [vmem:[%s7 + $0x88] sm:$0xff]
      %v1405 = vld [vmem:[%s7 + $0x90] sm:$0xff]
      %v1406 = vld [vmem:[%s7 + $0x98] sm:$0xff]
      %v1407 = vld [vmem:[%s7 + $0xa0] sm:$0xff]
      %v1408 = vld [vmem:[%s7 + $0xa8] sm:$0xff]
      %v1409 = vld [vmem:[%s7 + $0xb0] sm:$0xff]
      %v1410 = vld [vmem:[%s7 + $0xb8] sm:$0xff]
      %v1411 = vld [vmem:[%s7 + $0xc0] sm:$0xff]
      %v1412 = vld [vmem:[%s7 + $0xc8] sm:$0xff]
      %v1413 = vld [vmem:[%s7 + $0xd0] sm:$0xff]
      %v1414 = vld [vmem:[%s7 + $0xd8] sm:$0xff]
      %v1415 = vld [vmem:[%s7 + $0xe0] sm:$0xff]
      %v1416 = vld [vmem:[%s7 + $0xe8] sm:$0xff]
      %v1417 = vld [vmem:[%s7 + $0xf0] sm:$0xff]
      %v1418 = vld [vmem:[%s7 + $0xf8] sm:$0xff]
      %v1419 = vmul.f32 %v1355, %v1387
      %v1420 = vmul.f32 %v1356, %v1388
      %v1421 = vmul.f32 %v1357, %v1389
      %v1422 = vmul.f32 %v1358, %v1390
      %v1423 = vmul.f32 %v1359, %v1391
      %v1424 = vmul.f32 %v1360, %v1392
      %v1425 = vmul.f32 %v1361, %v1393
      %v1426 = vmul.f32 %v1362, %v1394
      %v1427 = vmul.f32 %v1363, %v1395
      %v1428 = vmul.f32 %v1364, %v1396
      %v1429 = vmul.f32 %v1365, %v1397
      %v1430 = vmul.f32 %v1366, %v1398
      %v1431 = vmul.f32 %v1367, %v1399
      %v1432 = vmul.f32 %v1368, %v1400
      %v1433 = vmul.f32 %v1369, %v1401
      %v1434 = vmul.f32 %v1370, %v1402
      %v1435 = vmul.f32 %v1371, %v1403
      %v1436 = vmul.f32 %v1372, %v1404
      %v1437 = vmul.f32 %v1373, %v1405
      %v1438 = vmul.f32 %v1374, %v1406
      %v1439 = vmul.f32 %v1375, %v1407
      %v1440 = vmul.f32 %v1376, %v1408
      %v1441 = vmul.f32 %v1377, %v1409
      %v1442 = vmul.f32 %v1378, %v1410
      %v1443 = vmul.f32 %v1379, %v1411
      %v1444 = vmul.f32 %v1380, %v1412
      %v1445 = vmul.f32 %v1381, %v1413
      %v1446 = vmul.f32 %v1382, %v1414
      %v1447 = vmul.f32 %v1383, %v1415
      %v1448 = vmul.f32 %v1384, %v1416
      %v1449 = vmul.f32 %v1385, %v1417
      %v1450 = vmul.f32 %v1386, %v1418
      %v1451 = vld [vmem:[%s8] sm:$0xff]
      %v1452 = vld [vmem:[%s8 + $0x8] sm:$0xff]
      %v1453 = vld [vmem:[%s8 + $0x10] sm:$0xff]
      %v1454 = vld [vmem:[%s8 + $0x18] sm:$0xff]
      %v1455 = vld [vmem:[%s8 + $0x20] sm:$0xff]
      %v1456 = vld [vmem:[%s8 + $0x28] sm:$0xff]
      %v1457 = vld [vmem:[%s8 + $0x30] sm:$0xff]
      %v1458 = vld [vmem:[%s8 + $0x38] sm:$0xff]
      %v1459 = vld [vmem:[%s8 + $0x40] sm:$0xff]
      %v1460 = vld [vmem:[%s8 + $0x48] sm:$0xff]
      %v1461 = vld [vmem:[%s8 + $0x50] sm:$0xff]
      %v1462 = vld [vmem:[%s8 + $0x58] sm:$0xff]
      %v1463 = vld [vmem:[%s8 + $0x60] sm:$0xff]
      %v1464 = vld [vmem:[%s8 + $0x68] sm:$0xff]
      %v1465 = vld [vmem:[%s8 + $0x70] sm:$0xff]
      %v1466 = vld [vmem:[%s8 + $0x78] sm:$0xff]
      %v1467 = vld [vmem:[%s8 + $0x80] sm:$0xff]
      %v1468 = vld [vmem:[%s8 + $0x88] sm:$0xff]
      %v1469 = vld [vmem:[%s8 + $0x90] sm:$0xff]
      %v1470 = vld [vmem:[%s8 + $0x98] sm:$0xff]
      %v1471 = vld [vmem:[%s8 + $0xa0] sm:$0xff]
      %v1472 = vld [vmem:[%s8 + $0xa8] sm:$0xff]
      %v1473 = vld [vmem:[%s8 + $0xb0] sm:$0xff]
      %v1474 = vld [vmem:[%s8 + $0xb8] sm:$0xff]
      %v1475 = vld [vmem:[%s8 + $0xc0] sm:$0xff]
      %v1476 = vld [vmem:[%s8 + $0xc8] sm:$0xff]
      %v1477 = vld [vmem:[%s8 + $0xd0] sm:$0xff]
      %v1478 = vld [vmem:[%s8 + $0xd8] sm:$0xff]
      %v1479 = vld [vmem:[%s8 + $0xe0] sm:$0xff]
      %v1480 = vld [vmem:[%s8 + $0xe8] sm:$0xff]
      %v1481 = vld [vmem:[%s8 + $0xf0] sm:$0xff]
      %v1482 = vld [vmem:[%s8 + $0xf8] sm:$0xff]
      %v1483 = vadd.f32 %v1419, %v1451
      %v1484 = vadd.f32 %v1420, %v1452
      %v1485 = vadd.f32 %v1421, %v1453
      %v1486 = vadd.f32 %v1422, %v1454
      %v1487 = vadd.f32 %v1423, %v1455
      %v1488 = vadd.f32 %v1424, %v1456
      %v1489 = vadd.f32 %v1425, %v1457
      %v1490 = vadd.f32 %v1426, %v1458
      %v1491 = vadd.f32 %v1427, %v1459
      %v1492 = vadd.f32 %v1428, %v1460
      %v1493 = vadd.f32 %v1429, %v1461
      %v1494 = vadd.f32 %v1430, %v1462
      %v1495 = vadd.f32 %v1431, %v1463
      %v1496 = vadd.f32 %v1432, %v1464
      %v1497 = vadd.f32 %v1433, %v1465
      %v1498 = vadd.f32 %v1434, %v1466
      %v1499 = vadd.f32 %v1435, %v1467
      %v1500 = vadd.f32 %v1436, %v1468
      %v1501 = vadd.f32 %v1437, %v1469
      %v1502 = vadd.f32 %v1438, %v1470
      %v1503 = vadd.f32 %v1439, %v1471
      %v1504 = vadd.f32 %v1440, %v1472
      %v1505 = vadd.f32 %v1441, %v1473
      %v1506 = vadd.f32 %v1442, %v1474
      %v1507 = vadd.f32 %v1443, %v1475
      %v1508 = vadd.f32 %v1444, %v1476
      %v1509 = vadd.f32 %v1445, %v1477
      %v1510 = vadd.f32 %v1446, %v1478
      %v1511 = vadd.f32 %v1447, %v1479
      %v1512 = vadd.f32 %v1448, %v1480
      %v1513 = vadd.f32 %v1449, %v1481
      %v1514 = vadd.f32 %v1450, %v1482
      %1515 = vmatprep.subr.bf16.mxu0 0
      %1516 = vmatpush1.bf16.msra.mxu0 1065369472
      %1517 = vmatprep.subr.bf16.mxu0 0
      %1518 = vmatpush1.bf16.msra.mxu0 1065369472
      %1519 = vmatprep.subr.bf16.mxu0 0
      %1520 = vmatpush1.bf16.msra.mxu0 1065369472
      %1521 = vmatprep.subr.bf16.mxu0 0
      %1522 = vmatpush1.bf16.msra.mxu0 1065369472
      %1523 = vmatprep.subr.bf16.mxu0 0
      %1524 = vmatpush1.bf16.msra.mxu0 1065369472
      %1525 = vmatprep.subr.bf16.mxu0 0
      %1526 = vmatpush1.bf16.msra.mxu0 1065369472
      %1527 = vmatprep.subr.bf16.mxu0 0
      %1528 = vmatpush1.bf16.msra.mxu0 1065369472
      %1529 = vmatprep.subr.bf16.mxu0 0
      %1530 = vmatpush1.bf16.msra.mxu0 1065369472
      %1531 = vmatprep.subr.bf16.mxu0 0
      %1532 = vmatpush1.bf16.msra.mxu0 1065369472
      %1533 = vmatprep.subr.bf16.mxu0 0
      %1534 = vmatpush1.bf16.msra.mxu0 1065369472
      %1535 = vmatprep.subr.bf16.mxu0 0
      %1536 = vmatpush1.bf16.msra.mxu0 1065369472
      %1537 = vmatprep.subr.bf16.mxu0 0
      %1538 = vmatpush1.bf16.msra.mxu0 1065369472
      %1539 = vmatprep.subr.bf16.mxu0 0
      %1540 = vmatpush1.bf16.msra.mxu0 1065369472
      %1541 = vmatprep.subr.bf16.mxu0 0
      %1542 = vmatpush1.bf16.msra.mxu0 1065369472
      %1543 = vmatprep.subr.bf16.mxu0 0
      %1544 = vmatpush1.bf16.msra.mxu0 1065369472
      %1545 = vmatprep.subr.bf16.mxu0 0
      %1546 = vmatpush1.bf16.msra.mxu0 1065369472
      %1547 = vmatprep.mubr.bf16.mxu0 %v400
      %1548 = vmatmul.mubr.bf16.gmra.mrb[0].mxu0 %v399
      %v1549 = vpop.f32.mrb[0].mxu0
      %v1550 = vadd.f32 0.0, %v1549
      %v1551 = vpop.f32.mrb[0].mxu0
      %v1552 = vpop.f32.mrb[0].mxu0
      %v1553 = vadd.f32 0.0, %v1552
      %v1554 = vpop.f32.mrb[0].mxu0
      %1555 = vmatprep.mubr.bf16.mxu0 %v402
      %1556 = vmatmul.mubr.bf16.gmra.mrb[0].mxu0 %v401
      %v1557 = vpop.f32.mrb[0].mxu0
      %v1558 = vadd.f32 0.0, %v1557
      %v1559 = vpop.f32.mrb[0].mxu0
      %v1560 = vpop.f32.mrb[0].mxu0
      %v1561 = vadd.f32 0.0, %v1560
      %v1562 = vpop.f32.mrb[0].mxu0
      %1563 = vmatprep.mubr.bf16.mxu0 %v404
      %1564 = vmatmul.mubr.bf16.gmra.mrb[0].mxu0 %v403
      %v1565 = vpop.f32.mrb[0].mxu0
      %v1566 = vadd.f32 0.0, %v1565
      %v1567 = vpop.f32.mrb[0].mxu0
      %v1568 = vpop.f32.mrb[0].mxu0
      %v1569 = vadd.f32 0.0, %v1568
      %v1570 = vpop.f32.mrb[0].mxu0
      %1571 = vmatprep.mubr.bf16.mxu0 %v406
      %1572 = vmatmul.mubr.bf16.gmra.mrb[0].mxu0 %v405
      %v1573 = vpop.f32.mrb[0].mxu0
      %v1574 = vadd.f32 0.0, %v1573
      %v1575 = vpop.f32.mrb[0].mxu0
      %v1576 = vpop.f32.mrb[0].mxu0
      %v1577 = vadd.f32 0.0, %v1576
      %v1578 = vpop.f32.mrb[0].mxu0
      %1579 = vmatprep.mubr.bf16.mxu0 %v408
      %1580 = vmatmul.mubr.bf16.gmra.mrb[0].mxu0 %v407
      %v1581 = vpop.f32.mrb[0].mxu0
      %v1582 = vadd.f32 0.0, %v1581
      %v1583 = vpop.f32.mrb[0].mxu0
      %v1584 = vpop.f32.mrb[0].mxu0
      %v1585 = vadd.f32 0.0, %v1584
      %v1586 = vpop.f32.mrb[0].mxu0
      %1587 = vmatprep.mubr.bf16.mxu0 %v410
      %1588 = vmatmul.mubr.bf16.gmra.mrb[0].mxu0 %v409
      %v1589 = vpop.f32.mrb[0].mxu0
      %v1590 = vadd.f32 0.0, %v1589
      %v1591 = vpop.f32.mrb[0].mxu0
      %v1592 = vpop.f32.mrb[0].mxu0
      %v1593 = vadd.f32 0.0, %v1592
      %v1594 = vpop.f32.mrb[0].mxu0
      %1595 = vmatprep.mubr.bf16.mxu0 %v412
      %1596 = vmatmul.mubr.bf16.gmra.mrb[0].mxu0 %v411
      %v1597 = vpop.f32.mrb[0].mxu0
      %v1598 = vadd.f32 0.0, %v1597
      %v1599 = vpop.f32.mrb[0].mxu0
      %v1600 = vpop.f32.mrb[0].mxu0
      %v1601 = vadd.f32 0.0, %v1600
      %v1602 = vpop.f32.mrb[0].mxu0
      %1603 = vmatprep.mubr.bf16.mxu0 %v414
      %1604 = vmatmul.mubr.bf16.gmra.mrb[0].mxu0 %v413
      %v1605 = vpop.f32.mrb[0].mxu0
      %v1606 = vadd.f32 0.0, %v1605
      %v1607 = vpop.f32.mrb[0].mxu0
      %v1608 = vpop.f32.mrb[0].mxu0
      %v1609 = vadd.f32 0.0, %v1608
      %v1610 = vpop.f32.mrb[0].mxu0
      %1611 = vmatprep.mubr.bf16.mxu0 %v416
      %1612 = vmatmul.mubr.bf16.gmra.mrb[0].mxu0 %v415
      %v1613 = vpop.f32.mrb[0].mxu0
      %v1614 = vadd.f32 0.0, %v1613
      %v1615 = vpop.f32.mrb[0].mxu0
      %v1616 = vpop.f32.mrb[0].mxu0
      %v1617 = vadd.f32 0.0, %v1616
      %v1618 = vpop.f32.mrb[0].mxu0
      %1619 = vmatprep.mubr.bf16.mxu0 %v418
      %1620 = vmatmul.mubr.bf16.gmra.mrb[0].mxu0 %v417
      %v1621 = vpop.f32.mrb[0].mxu0
      %v1622 = vadd.f32 0.0, %v1621
      %v1623 = vpop.f32.mrb[0].mxu0
      %v1624 = vpop.f32.mrb[0].mxu0
      %v1625 = vadd.f32 0.0, %v1624
      %v1626 = vpop.f32.mrb[0].mxu0
      %1627 = vmatprep.mubr.bf16.mxu0 %v420
      %1628 = vmatmul.mubr.bf16.gmra.mrb[0].mxu0 %v419
      %v1629 = vpop.f32.mrb[0].mxu0
      %v1630 = vadd.f32 0.0, %v1629
      %v1631 = vpop.f32.mrb[0].mxu0
      %v1632 = vpop.f32.mrb[0].mxu0
      %v1633 = vadd.f32 0.0, %v1632
      %v1634 = vpop.f32.mrb[0].mxu0
      %1635 = vmatprep.mubr.bf16.mxu0 %v422
      %1636 = vmatmul.mubr.bf16.gmra.mrb[0].mxu0 %v421
      %v1637 = vpop.f32.mrb[0].mxu0
      %v1638 = vadd.f32 0.0, %v1637
      %v1639 = vpop.f32.mrb[0].mxu0
      %v1640 = vpop.f32.mrb[0].mxu0
      %v1641 = vadd.f32 0.0, %v1640
      %v1642 = vpop.f32.mrb[0].mxu0
      %1643 = vmatprep.mubr.bf16.mxu0 %v424
      %1644 = vmatmul.mubr.bf16.gmra.mrb[0].mxu0 %v423
      %v1645 = vpop.f32.mrb[0].mxu0
      %v1646 = vadd.f32 0.0, %v1645
      %v1647 = vpop.f32.mrb[0].mxu0
      %v1648 = vpop.f32.mrb[0].mxu0
      %v1649 = vadd.f32 0.0, %v1648
      %v1650 = vpop.f32.mrb[0].mxu0
      %1651 = vmatprep.mubr.bf16.mxu0 %v426
      %1652 = vmatmul.mubr.bf16.gmra.mrb[0].mxu0 %v425
      %v1653 = vpop.f32.mrb[0].mxu0
      %v1654 = vadd.f32 0.0, %v1653
      %v1655 = vpop.f32.mrb[0].mxu0
      %v1656 = vpop.f32.mrb[0].mxu0
      %v1657 = vadd.f32 0.0, %v1656
      %v1658 = vpop.f32.mrb[0].mxu0
      %1659 = vmatprep.mubr.bf16.mxu0 %v428
      %1660 = vmatmul.mubr.bf16.gmra.mrb[0].mxu0 %v427
      %v1661 = vpop.f32.mrb[0].mxu0
      %v1662 = vadd.f32 0.0, %v1661
      %v1663 = vpop.f32.mrb[0].mxu0
      %v1664 = vpop.f32.mrb[0].mxu0
      %v1665 = vadd.f32 0.0, %v1664
      %v1666 = vpop.f32.mrb[0].mxu0
      %1667 = vmatprep.mubr.bf16.mxu0 %v430
      %1668 = vmatmul.mubr.bf16.gmra.mrb[0].mxu0 %v429
      %v1669 = vpop.f32.mrb[0].mxu0
      %v1670 = vadd.f32 0.0, %v1669
      %v1671 = vpop.f32.mrb[0].mxu0
      %v1672 = vpop.f32.mrb[0].mxu0
      %v1673 = vadd.f32 0.0, %v1672
      %v1674 = vpop.f32.mrb[0].mxu0
      %1675 = vdwg.mxu0
      %v1676 = vld [vmem:[%s3] sm:$0xff]
      %v1677 = vld [vmem:[%s3 + $0x8] sm:$0xff]
      %v1678 = vld [vmem:[%s3 + $0x10] sm:$0xff]
      %v1679 = vld [vmem:[%s3 + $0x18] sm:$0xff]
      %v1680 = vld [vmem:[%s3 + $0x20] sm:$0xff]
      %v1681 = vld [vmem:[%s3 + $0x28] sm:$0xff]
      %v1682 = vld [vmem:[%s3 + $0x30] sm:$0xff]
      %v1683 = vld [vmem:[%s3 + $0x38] sm:$0xff]
      %v1684 = vld [vmem:[%s3 + $0x40] sm:$0xff]
      %v1685 = vld [vmem:[%s3 + $0x48] sm:$0xff]
      %v1686 = vld [vmem:[%s3 + $0x50] sm:$0xff]
      %v1687 = vld [vmem:[%s3 + $0x58] sm:$0xff]
      %v1688 = vld [vmem:[%s3 + $0x60] sm:$0xff]
      %v1689 = vld [vmem:[%s3 + $0x68] sm:$0xff]
      %v1690 = vld [vmem:[%s3 + $0x70] sm:$0xff]
      %v1691 = vld [vmem:[%s3 + $0x78] sm:$0xff]
      %v1692 = vpack.c.bf16 %v1553, %v1550
      %v1693 = vpack.c.bf16 %v1561, %v1558
      %v1694 = vpack.c.bf16 %v1569, %v1566
      %v1695 = vpack.c.bf16 %v1577, %v1574
      %v1696 = vpack.c.bf16 %v1585, %v1582
      %v1697 = vpack.c.bf16 %v1593, %v1590
      %v1698 = vpack.c.bf16 %v1601, %v1598
      %v1699 = vpack.c.bf16 %v1609, %v1606
      %v1700 = vpack.c.bf16 %v1617, %v1614
      %v1701 = vpack.c.bf16 %v1625, %v1622
      %v1702 = vpack.c.bf16 %v1633, %v1630
      %v1703 = vpack.c.bf16 %v1641, %v1638
      %v1704 = vpack.c.bf16 %v1649, %v1646
      %v1705 = vpack.c.bf16 %v1657, %v1654
      %v1706 = vpack.c.bf16 %v1665, %v1662
      %v1707 = vpack.c.bf16 %v1673, %v1670
      %v1724 = vunpack.c.l.b16 %v1676
      %v1725 = vunpack.c.h.b16 %v1676
      %v1726 = vunpack.c.l.b16 %v1677
      %v1727 = vunpack.c.h.b16 %v1677
      %v1728 = vunpack.c.l.b16 %v1678
      %v1729 = vunpack.c.h.b16 %v1678
      %v1730 = vunpack.c.l.b16 %v1679
      %v1731 = vunpack.c.h.b16 %v1679
      %v1732 = vunpack.c.l.b16 %v1680
      %v1733 = vunpack.c.h.b16 %v1680
      %v1734 = vunpack.c.l.b16 %v1681
      %v1735 = vunpack.c.h.b16 %v1681
      %v1736 = vunpack.c.l.b16 %v1682
      %v1737 = vunpack.c.h.b16 %v1682
      %v1738 = vunpack.c.l.b16 %v1683
      %v1739 = vunpack.c.h.b16 %v1683
      %v1740 = vunpack.c.l.b16 %v1684
      %v1741 = vunpack.c.h.b16 %v1684
      %v1742 = vunpack.c.l.b16 %v1685
      %v1743 = vunpack.c.h.b16 %v1685
      %v1744 = vunpack.c.l.b16 %v1686
      %v1745 = vunpack.c.h.b16 %v1686
      %v1746 = vunpack.c.l.b16 %v1687
      %v1747 = vunpack.c.h.b16 %v1687
      %v1748 = vunpack.c.l.b16 %v1688
      %v1749 = vunpack.c.h.b16 %v1688
      %v1750 = vunpack.c.l.b16 %v1689
      %v1751 = vunpack.c.h.b16 %v1689
      %v1752 = vunpack.c.l.b16 %v1690
      %v1753 = vunpack.c.h.b16 %v1690
      %v1754 = vunpack.c.l.b16 %v1691
      %v1755 = vunpack.c.h.b16 %v1691
      %v1756 = vpack.c.b16 %v1726, %v1724
      %v1757 = vpack.c.b16 %v1727, %v1725
      %v1758 = vpack.c.b16 %v1730, %v1728
      %v1759 = vpack.c.b16 %v1731, %v1729
      %v1760 = vpack.c.b16 %v1734, %v1732
      %v1761 = vpack.c.b16 %v1735, %v1733
      %v1762 = vpack.c.b16 %v1738, %v1736
      %v1763 = vpack.c.b16 %v1739, %v1737
      %v1764 = vpack.c.b16 %v1742, %v1740
      %v1765 = vpack.c.b16 %v1743, %v1741
      %v1766 = vpack.c.b16 %v1746, %v1744
      %v1767 = vpack.c.b16 %v1747, %v1745
      %v1768 = vpack.c.b16 %v1750, %v1748
      %v1769 = vpack.c.b16 %v1751, %v1749
      %v1770 = vpack.c.b16 %v1754, %v1752
      %v1771 = vpack.c.b16 %v1755, %v1753
      %1788 = vmatprep.subr.bf16.mxu0 0
      %1789 = vmatpush1.bf16.msra.mxu0 %v1692
      %1790 = vmatprep.subr.bf16.mxu0 0
      %1791 = vmatpush1.bf16.msra.mxu0 %v1693
      %1792 = vmatprep.subr.bf16.mxu0 0
      %1793 = vmatpush1.bf16.msra.mxu0 %v1694
      %1794 = vmatprep.subr.bf16.mxu0 0
      %1795 = vmatpush1.bf16.msra.mxu0 %v1695
      %1796 = vmatprep.subr.bf16.mxu0 0
      %1797 = vmatpush1.bf16.msra.mxu0 %v1696
      %1798 = vmatprep.subr.bf16.mxu0 0
      %1799 = vmatpush1.bf16.msra.mxu0 %v1697
      %1800 = vmatprep.subr.bf16.mxu0 0
      %1801 = vmatpush1.bf16.msra.mxu0 %v1698
      %1802 = vmatprep.subr.bf16.mxu0 0
      %1803 = vmatpush1.bf16.msra.mxu0 %v1699
      %1804 = vmatprep.subr.bf16.mxu0 0
      %1805 = vmatpush1.bf16.msra.mxu0 %v1700
      %1806 = vmatprep.subr.bf16.mxu0 0
      %1807 = vmatpush1.bf16.msra.mxu0 %v1701
      %1808 = vmatprep.subr.bf16.mxu0 0
      %1809 = vmatpush1.bf16.msra.mxu0 %v1702
      %1810 = vmatprep.subr.bf16.mxu0 0
      %1811 = vmatpush1.bf16.msra.mxu0 %v1703
      %1812 = vmatprep.subr.bf16.mxu0 0
      %1813 = vmatpush1.bf16.msra.mxu0 %v1704
      %1814 = vmatprep.subr.bf16.mxu0 0
      %1815 = vmatpush1.bf16.msra.mxu0 %v1705
      %1816 = vmatprep.subr.bf16.mxu0 0
      %1817 = vmatpush1.bf16.msra.mxu0 %v1706
      %1818 = vmatprep.subr.bf16.mxu0 0
      %1819 = vmatpush1.bf16.msra.mxu0 %v1707
      %1820 = vmatprep.mubr.bf16.mxu0 %v1757
      %1821 = vmatmul.mubr.bf16.gmra.mrb[0].mxu0 %v1756
      %v1822 = vpop.f32.mrb[0].mxu0
      %v1823 = vadd.f32 0.0, %v1822
      %v1824 = vpop.f32.mrb[0].mxu0
      %v1825 = vpop.f32.mrb[0].mxu0
      %v1826 = vadd.f32 0.0, %v1825
      %v1827 = vpop.f32.mrb[0].mxu0
      %1828 = vmatprep.mubr.bf16.mxu0 %v1759
      %1829 = vmatmul.mubr.bf16.gmra.mrb[0].mxu0 %v1758
      %v1830 = vpop.f32.mrb[0].mxu0
      %v1831 = vadd.f32 0.0, %v1830
      %v1832 = vpop.f32.mrb[0].mxu0
      %v1833 = vpop.f32.mrb[0].mxu0
      %v1834 = vadd.f32 0.0, %v1833
      %v1835 = vpop.f32.mrb[0].mxu0
      %1836 = vmatprep.mubr.bf16.mxu0 %v1761
      %1837 = vmatmul.mubr.bf16.gmra.mrb[0].mxu0 %v1760
      %v1838 = vpop.f32.mrb[0].mxu0
      %v1839 = vadd.f32 0.0, %v1838
      %v1840 = vpop.f32.mrb[0].mxu0
      %v1841 = vpop.f32.mrb[0].mxu0
      %v1842 = vadd.f32 0.0, %v1841
      %v1843 = vpop.f32.mrb[0].mxu0
      %1844 = vmatprep.mubr.bf16.mxu0 %v1763
      %1845 = vmatmul.mubr.bf16.gmra.mrb[0].mxu0 %v1762
      %v1846 = vpop.f32.mrb[0].mxu0
      %v1847 = vadd.f32 0.0, %v1846
      %v1848 = vpop.f32.mrb[0].mxu0
      %v1849 = vpop.f32.mrb[0].mxu0
      %v1850 = vadd.f32 0.0, %v1849
      %v1851 = vpop.f32.mrb[0].mxu0
      %1852 = vmatprep.mubr.bf16.mxu0 %v1765
      %1853 = vmatmul.mubr.bf16.gmra.mrb[0].mxu0 %v1764
      %v1854 = vpop.f32.mrb[0].mxu0
      %v1855 = vadd.f32 0.0, %v1854
      %v1856 = vpop.f32.mrb[0].mxu0
      %v1857 = vpop.f32.mrb[0].mxu0
      %v1858 = vadd.f32 0.0, %v1857
      %v1859 = vpop.f32.mrb[0].mxu0
      %1860 = vmatprep.mubr.bf16.mxu0 %v1767
      %1861 = vmatmul.mubr.bf16.gmra.mrb[0].mxu0 %v1766
      %v1862 = vpop.f32.mrb[0].mxu0
      %v1863 = vadd.f32 0.0, %v1862
      %v1864 = vpop.f32.mrb[0].mxu0
      %v1865 = vpop.f32.mrb[0].mxu0
      %v1866 = vadd.f32 0.0, %v1865
      %v1867 = vpop.f32.mrb[0].mxu0
      %1868 = vmatprep.mubr.bf16.mxu0 %v1769
      %1869 = vmatmul.mubr.bf16.gmra.mrb[0].mxu0 %v1768
      %v1870 = vpop.f32.mrb[0].mxu0
      %v1871 = vadd.f32 0.0, %v1870
      %v1872 = vpop.f32.mrb[0].mxu0
      %v1873 = vpop.f32.mrb[0].mxu0
      %v1874 = vadd.f32 0.0, %v1873
      %v1875 = vpop.f32.mrb[0].mxu0
      %1876 = vmatprep.mubr.bf16.mxu0 %v1771
      %1877 = vmatmul.mubr.bf16.gmra.mrb[0].mxu0 %v1770
      %v1878 = vpop.f32.mrb[0].mxu0
      %v1879 = vadd.f32 0.0, %v1878
      %v1880 = vpop.f32.mrb[0].mxu0
      %v1881 = vpop.f32.mrb[0].mxu0
      %v1882 = vadd.f32 0.0, %v1881
      %v1883 = vpop.f32.mrb[0].mxu0
      %1884 = vdwg.mxu0
      %v1885 = vmul.f32 %v1823, 0.00390625
      %v1886 = vmul.f32 %v1826, 0.00390625
      %v1887 = vmul.f32 %v1831, 0.00390625
      %v1888 = vmul.f32 %v1834, 0.00390625
      %v1889 = vmul.f32 %v1839, 0.00390625
      %v1890 = vmul.f32 %v1842, 0.00390625
      %v1891 = vmul.f32 %v1847, 0.00390625
      %v1892 = vmul.f32 %v1850, 0.00390625
      %v1893 = vmul.f32 %v1855, 0.00390625
      %v1894 = vmul.f32 %v1858, 0.00390625
      %v1895 = vmul.f32 %v1863, 0.00390625
      %v1896 = vmul.f32 %v1866, 0.00390625
      %v1897 = vmul.f32 %v1871, 0.00390625
      %v1898 = vmul.f32 %v1874, 0.00390625
      %v1899 = vmul.f32 %v1879, 0.00390625
      %v1900 = vmul.f32 %v1882, 0.00390625
      %v1901 = vld [vmem:[%s4] sm:$0xff]
      %v1902 = vld [vmem:[%s4 + $0x8] sm:$0xff]
      %v1903 = vld [vmem:[%s4 + $0x10] sm:$0xff]
      %v1904 = vld [vmem:[%s4 + $0x18] sm:$0xff]
      %v1905 = vld [vmem:[%s4 + $0x20] sm:$0xff]
      %v1906 = vld [vmem:[%s4 + $0x28] sm:$0xff]
      %v1907 = vld [vmem:[%s4 + $0x30] sm:$0xff]
      %v1908 = vld [vmem:[%s4 + $0x38] sm:$0xff]
      %v1909 = vld [vmem:[%s4 + $0x40] sm:$0xff]
      %v1910 = vld [vmem:[%s4 + $0x48] sm:$0xff]
      %v1911 = vld [vmem:[%s4 + $0x50] sm:$0xff]
      %v1912 = vld [vmem:[%s4 + $0x58] sm:$0xff]
      %v1913 = vld [vmem:[%s4 + $0x60] sm:$0xff]
      %v1914 = vld [vmem:[%s4 + $0x68] sm:$0xff]
      %v1915 = vld [vmem:[%s4 + $0x70] sm:$0xff]
      %v1916 = vld [vmem:[%s4 + $0x78] sm:$0xff]
      %v1917 = vadd.f32 %v1885, %v1901
      %v1918 = vadd.f32 %v1886, %v1902
      %v1919 = vadd.f32 %v1887, %v1903
      %v1920 = vadd.f32 %v1888, %v1904
      %v1921 = vadd.f32 %v1889, %v1905
      %v1922 = vadd.f32 %v1890, %v1906
      %v1923 = vadd.f32 %v1891, %v1907
      %v1924 = vadd.f32 %v1892, %v1908
      %v1925 = vadd.f32 %v1893, %v1909
      %v1926 = vadd.f32 %v1894, %v1910
      %v1927 = vadd.f32 %v1895, %v1911
      %v1928 = vadd.f32 %v1896, %v1912
      %v1929 = vadd.f32 %v1897, %v1913
      %v1930 = vadd.f32 %v1898, %v1914
      %v1931 = vadd.f32 %v1899, %v1915
      %v1932 = vadd.f32 %v1900, %v1916
      %v1933 = vsel %vm1147, %v1917, -inf
      %v1934 = vsel %vm1147, %v1918, -inf
      %v1935 = vsel %vm1147, %v1919, -inf
      %v1936 = vsel %vm1147, %v1920, -inf
      %v1937 = vsel %vm1147, %v1921, -inf
      %v1938 = vmax.f32 %v1933, %v1937
      %v1939 = vsel %vm1147, %v1922, -inf
      %v1940 = vmax.f32 %v1934, %v1939
      %v1941 = vsel %vm1147, %v1923, -inf
      %v1942 = vmax.f32 %v1935, %v1941
      %v1943 = vsel %vm1147, %v1924, -inf
      %v1944 = vmax.f32 %v1936, %v1943
      %v1945 = vsel %vm1147, %v1925, -inf
      %v1946 = vmax.f32 %v1938, %v1945
      %v1947 = vsel %vm1147, %v1926, -inf
      %v1948 = vmax.f32 %v1940, %v1947
      %v1949 = vsel %vm1147, %v1927, -inf
      %v1950 = vmax.f32 %v1942, %v1949
      %v1951 = vsel %vm1147, %v1928, -inf
      %v1952 = vmax.f32 %v1944, %v1951
      %v1953 = vsel %vm1147, %v1929, -inf
      %v1954 = vmax.f32 %v1946, %v1953
      %v1955 = vsel %vm1147, %v1930, -inf
      %v1956 = vmax.f32 %v1948, %v1955
      %v1957 = vsel %vm1147, %v1931, -inf
      %v1958 = vmax.f32 %v1950, %v1957
      %v1959 = vsel %vm1147, %v1932, -inf
      %v1960 = vmax.f32 %v1952, %v1959
      %v1961 = vmax.f32 %v1954, %v1956
      %v1962 = vmax.f32 %v1958, %v1960
      %v1963 = vmax.f32 %v1961, %v1962
      %v1964 = vrot.slane %v1963, 4
      %v1965 = vmax.f32 %v1963, %v1964
      %v1966 = vrot.slane %v1965, 2
      %v1967 = vmax.f32 %v1965, %v1966
      %v1968 = vrot.slane %v1967, 1
      %v1969 = vmax.f32 %v1967, %v1968
      %v1970 = vsub.f32 %v1917, %v1969
      %v1971 = vsub.f32 %v1918, %v1969
      %v1972 = vsub.f32 %v1919, %v1969
      %v1973 = vsub.f32 %v1920, %v1969
      %v1974 = vsub.f32 %v1921, %v1969
      %v1975 = vsub.f32 %v1922, %v1969
      %v1976 = vsub.f32 %v1923, %v1969
      %v1977 = vsub.f32 %v1924, %v1969
      %v1978 = vsub.f32 %v1925, %v1969
      %v1979 = vsub.f32 %v1926, %v1969
      %v1980 = vsub.f32 %v1927, %v1969
      %v1981 = vsub.f32 %v1928, %v1969
      %v1982 = vsub.f32 %v1929, %v1969
      %v1983 = vsub.f32 %v1930, %v1969
      %v1984 = vsub.f32 %v1931, %v1969
      %v1985 = vsub.f32 %v1932, %v1969
      %v1986 = vmul.f32 %v1970, 1.442695
      %v1987 = vpow.pop %v1986
      %v1988 = vmul.f32 %v1971, 1.442695
      %v1989 = vpow.pop %v1988
      %v1990 = vmul.f32 %v1972, 1.442695
      %v1991 = vpow.pop %v1990
      %v1992 = vmul.f32 %v1973, 1.442695
      %v1993 = vpow.pop %v1992
      %v1994 = vmul.f32 %v1974, 1.442695
      %v1995 = vpow.pop %v1994
      %v1996 = vmul.f32 %v1975, 1.442695
      %v1997 = vpow.pop %v1996
      %v1998 = vmul.f32 %v1976, 1.442695
      %v1999 = vpow.pop %v1998
      %v2000 = vmul.f32 %v1977, 1.442695
      %v2001 = vpow.pop %v2000
      %v2002 = vmul.f32 %v1978, 1.442695
      %v2003 = vpow.pop %v2002
      %v2004 = vmul.f32 %v1979, 1.442695
      %v2005 = vpow.pop %v2004
      %v2006 = vmul.f32 %v1980, 1.442695
      %v2007 = vpow.pop %v2006
      %v2008 = vmul.f32 %v1981, 1.442695
      %v2009 = vpow.pop %v2008
      %v2010 = vmul.f32 %v1982, 1.442695
      %v2011 = vpow.pop %v2010
      %v2012 = vmul.f32 %v1983, 1.442695
      %v2013 = vpow.pop %v2012
      %v2014 = vmul.f32 %v1984, 1.442695
      %v2015 = vpow.pop %v2014
      %v2016 = vmul.f32 %v1985, 1.442695
      %v2017 = vpow.pop %v2016
      %v2018 = vsel %vm1147, %v1987, 0.0
      %v2019 = vsel %vm1147, %v1989, 0.0
      %v2020 = vadd.f32 %v2018, %v2019
      %v2021 = vsel %vm1147, %v1991, 0.0
      %v2022 = vadd.f32 %v2020, %v2021
      %v2023 = vsel %vm1147, %v1993, 0.0
      %v2024 = vadd.f32 %v2022, %v2023
      %v2025 = vsel %vm1147, %v1995, 0.0
      %v2026 = vadd.f32 %v2024, %v2025
      %v2027 = vsel %vm1147, %v1997, 0.0
      %v2028 = vadd.f32 %v2026, %v2027
      %v2029 = vsel %vm1147, %v1999, 0.0
      %v2030 = vadd.f32 %v2028, %v2029
      %v2031 = vsel %vm1147, %v2001, 0.0
      %v2032 = vadd.f32 %v2030, %v2031
      %v2033 = vsel %vm1147, %v2003, 0.0
      %v2034 = vadd.f32 %v2032, %v2033
      %v2035 = vsel %vm1147, %v2005, 0.0
      %v2036 = vadd.f32 %v2034, %v2035
      %v2037 = vsel %vm1147, %v2007, 0.0
      %v2038 = vadd.f32 %v2036, %v2037
      %v2039 = vsel %vm1147, %v2009, 0.0
      %v2040 = vadd.f32 %v2038, %v2039
      %v2041 = vsel %vm1147, %v2011, 0.0
      %v2042 = vadd.f32 %v2040, %v2041
      %v2043 = vsel %vm1147, %v2013, 0.0
      %v2044 = vadd.f32 %v2042, %v2043
      %v2045 = vsel %vm1147, %v2015, 0.0
      %v2046 = vadd.f32 %v2044, %v2045
      %v2047 = vsel %vm1147, %v2017, 0.0
      %v2048 = vadd.f32 %v2046, %v2047
      %v2049 = vrot.slane %v2048, 4
      %v2050 = vadd.f32 %v2048, %v2049
      %v2051 = vrot.slane %v2050, 2
      %v2052 = vadd.f32 %v2050, %v2051
      %v2053 = vrot.slane %v2052, 1
      %v2054 = vadd.f32 %v2052, %v2053
      %v2055 = vrcp.pop %v2054
      %v2056 = vmul.f32 %v1987, %v2055
      %v2057 = vmul.f32 %v1989, %v2055
      %v2058 = vmul.f32 %v1991, %v2055
      %v2059 = vmul.f32 %v1993, %v2055
      %v2060 = vmul.f32 %v1995, %v2055
      %v2061 = vmul.f32 %v1997, %v2055
      %v2062 = vmul.f32 %v1999, %v2055
      %v2063 = vmul.f32 %v2001, %v2055
      %v2064 = vmul.f32 %v2003, %v2055
      %v2065 = vmul.f32 %v2005, %v2055
      %v2066 = vmul.f32 %v2007, %v2055
      %v2067 = vmul.f32 %v2009, %v2055
      %v2068 = vmul.f32 %v2011, %v2055
      %v2069 = vmul.f32 %v2013, %v2055
      %v2070 = vmul.f32 %v2015, %v2055
      %v2071 = vmul.f32 %v2017, %v2055
      %v2072 = vmul.f32 %v2056, %v786
      %v2073 = vmul.f32 %v2057, %v787
      %v2074 = vmul.f32 %v2058, %v788
      %v2075 = vmul.f32 %v2059, %v789
      %v2076 = vmul.f32 %v2060, %v790
      %v2077 = vmul.f32 %v2061, %v791
      %v2078 = vmul.f32 %v2062, %v792
      %v2079 = vmul.f32 %v2063, %v793
      %v2080 = vmul.f32 %v2064, %v794
      %v2081 = vmul.f32 %v2065, %v795
      %v2082 = vmul.f32 %v2066, %v796
      %v2083 = vmul.f32 %v2067, %v797
      %v2084 = vmul.f32 %v2068, %v798
      %v2085 = vmul.f32 %v2069, %v799
      %v2086 = vmul.f32 %v2070, %v800
      %v2087 = vmul.f32 %v2071, %v801
      %v2088 = vsel %vm1147, %v2072, 0.0
      %v2089 = vsel %vm1147, %v2073, 0.0
      %v2090 = vadd.f32 %v2088, %v2089
      %v2091 = vsel %vm1147, %v2074, 0.0
      %v2092 = vadd.f32 %v2090, %v2091
      %v2093 = vsel %vm1147, %v2075, 0.0
      %v2094 = vadd.f32 %v2092, %v2093
      %v2095 = vsel %vm1147, %v2076, 0.0
      %v2096 = vadd.f32 %v2094, %v2095
      %v2097 = vsel %vm1147, %v2077, 0.0
      %v2098 = vadd.f32 %v2096, %v2097
      %v2099 = vsel %vm1147, %v2078, 0.0
      %v2100 = vadd.f32 %v2098, %v2099
      %v2101 = vsel %vm1147, %v2079, 0.0
      %v2102 = vadd.f32 %v2100, %v2101
      %v2103 = vsel %vm1147, %v2080, 0.0
      %v2104 = vadd.f32 %v2102, %v2103
      %v2105 = vsel %vm1147, %v2081, 0.0
      %v2106 = vadd.f32 %v2104, %v2105
      %v2107 = vsel %vm1147, %v2082, 0.0
      %v2108 = vadd.f32 %v2106, %v2107
      %v2109 = vsel %vm1147, %v2083, 0.0
      %v2110 = vadd.f32 %v2108, %v2109
      %v2111 = vsel %vm1147, %v2084, 0.0
      %v2112 = vadd.f32 %v2110, %v2111
      %v2113 = vsel %vm1147, %v2085, 0.0
      %v2114 = vadd.f32 %v2112, %v2113
      %v2115 = vsel %vm1147, %v2086, 0.0
      %v2116 = vadd.f32 %v2114, %v2115
      %v2117 = vsel %vm1147, %v2087, 0.0
      %v2118 = vadd.f32 %v2116, %v2117
      %v2119 = vrot.slane %v2118, 4
      %v2120 = vadd.f32 %v2118, %v2119
      %v2121 = vrot.slane %v2120, 2
      %v2122 = vadd.f32 %v2120, %v2121
      %v2123 = vrot.slane %v2122, 1
      %v2124 = vadd.f32 %v2122, %v2123
      %2126 = vset.pattern.permute.xlu0 0
      %2127 = vperm.xlu0 %2126, %v2124
      %v2128 = vpop.permute.xlu0 %2127
      %2130 = vxpose.xlu0.b32.start [1/16] %v2056, 128
      %2131 = vxpose.xlu0.b32.cont [2/16] %v2057, 128
      %2132 = vxpose.xlu0.b32.cont [3/16] %v2058, 128
      %2133 = vxpose.xlu0.b32.cont [4/16] %v2059, 128
      %2134 = vxpose.xlu0.b32.cont [5/16] %v2060, 128
      %2135 = vxpose.xlu0.b32.cont [6/16] %v2061, 128
      %2136 = vxpose.xlu0.b32.cont [7/16] %v2062, 128
      %2137 = vxpose.xlu0.b32.cont [8/16] %v2063, 128
      %2138 = vxpose.xlu0.b32.cont [9/16] %v2064, 128
      %2139 = vxpose.xlu0.b32.cont [10/16] %v2065, 128
      %2140 = vxpose.xlu0.b32.cont [11/16] %v2066, 128
      %2141 = vxpose.xlu0.b32.cont [12/16] %v2067, 128
      %2142 = vxpose.xlu0.b32.cont [13/16] %v2068, 128
      %2143 = vxpose.xlu0.b32.cont [14/16] %v2069, 128
      %2144 = vxpose.xlu0.b32.cont [15/16] %v2070, 128
      %2145 = vxpose.xlu0.b32.end [16/16] %v2071, 128
      %v2146 = vpop.trf.xlu0
      %v2147 = vpop.trf.xlu0
      %v2148 = vpop.trf.xlu0
      %v2149 = vpop.trf.xlu0
      %v2150 = vpop.trf.xlu0
      %v2151 = vpop.trf.xlu0
      %v2152 = vpop.trf.xlu0
      %v2153 = vpop.trf.xlu0
      %v2154 = vpop.trf.xlu0
      %v2155 = vpop.trf.xlu0
      %v2156 = vpop.trf.xlu0
      %v2157 = vpop.trf.xlu0
      %v2158 = vpop.trf.xlu0
      %v2159 = vpop.trf.xlu0
      %v2160 = vpop.trf.xlu0
      %v2161 = vpop.trf.xlu0
      %2162 = vmatprep.subr.mxu0 %v576
      %2163 = vmatpush1.msra.mxu0 %v574
      %2164 = vmatprep.subr.mxu0 %v580
      %2165 = vmatpush1.msra.mxu0 %v578
      %2166 = vmatprep.subr.mxu0 %v586
      %2167 = vmatpush1.msra.mxu0 %v584
      %2168 = vmatprep.subr.mxu0 %v590
      %2169 = vmatpush1.msra.mxu0 %v588
      %2170 = vmatprep.subr.mxu0 %v596
      %2171 = vmatpush1.msra.mxu0 %v594
      %2172 = vmatprep.subr.mxu0 %v600
      %2173 = vmatpush1.msra.mxu0 %v598
      %2174 = vmatprep.subr.mxu0 %v606
      %2175 = vmatpush1.msra.mxu0 %v604
      %2176 = vmatprep.subr.mxu0 %v610
      %2177 = vmatpush1.msra.mxu0 %v608
      %2178 = vmatprep.subr.mxu0 %v616
      %2179 = vmatpush1.msra.mxu0 %v614
      %2180 = vmatprep.subr.mxu0 %v620
      %2181 = vmatpush1.msra.mxu0 %v618
      %2182 = vmatprep.subr.mxu0 %v626
      %2183 = vmatpush1.msra.mxu0 %v624
      %2184 = vmatprep.subr.mxu0 %v630
      %2185 = vmatpush1.msra.mxu0 %v628
      %2186 = vmatprep.subr.mxu0 %v636
      %2187 = vmatpush1.msra.mxu0 %v634
      %2188 = vmatprep.subr.mxu0 %v640
      %2189 = vmatpush1.msra.mxu0 %v638
      %2190 = vmatprep.subr.mxu0 %v646
      %2191 = vmatpush1.msra.mxu0 %v644
      %2192 = vmatprep.subr.mxu0 %v650
      %2193 = vmatpush1.msra.mxu0 %v648
      %2194 = vmatprep.subr.mxu0 0.0
      %2195 = vmatpush1.msra.mxu0 0.0
      %2196 = vmatprep.subr.mxu0 0.0
      %2197 = vmatpush1.msra.mxu0 0.0
      %2198 = vmatprep.subr.mxu0 0.0
      %2199 = vmatpush1.msra.mxu0 0.0
      %2200 = vmatprep.subr.mxu0 0.0
      %2201 = vmatpush1.msra.mxu0 0.0
      %2202 = vmatprep.subr.mxu0 0.0
      %2203 = vmatpush1.msra.mxu0 0.0
      %2204 = vmatprep.subr.mxu0 0.0
      %2205 = vmatpush1.msra.mxu0 0.0
      %2206 = vmatprep.subr.mxu0 0.0
      %2207 = vmatpush1.msra.mxu0 0.0
      %2208 = vmatprep.subr.mxu0 0.0
      %2209 = vmatpush1.msra.mxu0 0.0
      %2210 = vmatprep.subr.mxu0 0.0
      %2211 = vmatpush1.msra.mxu0 0.0
      %2212 = vmatprep.subr.mxu0 0.0
      %2213 = vmatpush1.msra.mxu0 0.0
      %2214 = vmatprep.subr.mxu0 0.0
      %2215 = vmatpush1.msra.mxu0 0.0
      %2216 = vmatprep.subr.mxu0 0.0
      %2217 = vmatpush1.msra.mxu0 0.0
      %2218 = vmatprep.subr.mxu0 0.0
      %2219 = vmatpush1.msra.mxu0 0.0
      %2220 = vmatprep.subr.mxu0 0.0
      %2221 = vmatpush1.msra.mxu0 0.0
      %2222 = vmatprep.subr.mxu0 0.0
      %2223 = vmatpush1.msra.mxu0 0.0
      %2224 = vmatprep.subr.mxu0 0.0
      %2225 = vmatpush1.msra.mxu0 0.0
      %2226 = vmatprep.mubr.f32.mxu0 0.0
      %2227 = vmatmul.mubr.f32.gmra.mrb[0].mxu0 %v2146
      %v2228 = vpop.f32.mrb[0].mxu0
      %v2229 = vadd.f32 %v2128, %v2228
      %v2230 = vpop.f32.mrb[0].mxu0
      %v2231 = vadd.f32 %v2128, %v2230
      %2232 = vdwg.mxu0
      %v2233 = vxor.u32 %v1483, 2147483648
      %v2234 = vxor.u32 %v1484, 2147483648
      %v2235 = vxor.u32 %v1485, 2147483648
      %v2236 = vxor.u32 %v1486, 2147483648
      %v2237 = vxor.u32 %v1487, 2147483648
      %v2238 = vxor.u32 %v1488, 2147483648
      %v2239 = vxor.u32 %v1489, 2147483648
      %v2240 = vxor.u32 %v1490, 2147483648
      %v2241 = vxor.u32 %v1491, 2147483648
      %v2242 = vxor.u32 %v1492, 2147483648
      %v2243 = vxor.u32 %v1493, 2147483648
      %v2244 = vxor.u32 %v1494, 2147483648
      %v2245 = vxor.u32 %v1495, 2147483648
      %v2246 = vxor.u32 %v1496, 2147483648
      %v2247 = vxor.u32 %v1497, 2147483648
      %v2248 = vxor.u32 %v1498, 2147483648
      %v2249 = vxor.u32 %v1499, 2147483648
      %v2250 = vxor.u32 %v1500, 2147483648
      %v2251 = vxor.u32 %v1501, 2147483648
      %v2252 = vxor.u32 %v1502, 2147483648
      %v2253 = vxor.u32 %v1503, 2147483648
      %v2254 = vxor.u32 %v1504, 2147483648
      %v2255 = vxor.u32 %v1505, 2147483648
      %v2256 = vxor.u32 %v1506, 2147483648
      %v2257 = vxor.u32 %v1507, 2147483648
      %v2258 = vxor.u32 %v1508, 2147483648
      %v2259 = vxor.u32 %v1509, 2147483648
      %v2260 = vxor.u32 %v1510, 2147483648
      %v2261 = vxor.u32 %v1511, 2147483648
      %v2262 = vxor.u32 %v1512, 2147483648
      %v2263 = vxor.u32 %v1513, 2147483648
      %v2264 = vxor.u32 %v1514, 2147483648
      %v2265 = vmul.f32 %v2233, 1.442695
      %v2266 = vpow.pop %v2265
      %v2267 = vmul.f32 %v2234, 1.442695
      %v2268 = vpow.pop %v2267
      %v2269 = vmul.f32 %v2235, 1.442695
      %v2270 = vpow.pop %v2269
      %v2271 = vmul.f32 %v2236, 1.442695
      %v2272 = vpow.pop %v2271
      %v2273 = vmul.f32 %v2237, 1.442695
      %v2274 = vpow.pop %v2273
      %v2275 = vmul.f32 %v2238, 1.442695
      %v2276 = vpow.pop %v2275
      %v2277 = vmul.f32 %v2239, 1.442695
      %v2278 = vpow.pop %v2277
      %v2279 = vmul.f32 %v2240, 1.442695
      %v2280 = vpow.pop %v2279
      %v2281 = vmul.f32 %v2241, 1.442695
      %v2282 = vpow.pop %v2281
      %v2283 = vmul.f32 %v2242, 1.442695
      %v2284 = vpow.pop %v2283
      %v2285 = vmul.f32 %v2243, 1.442695
      %v2286 = vpow.pop %v2285
      %v2287 = vmul.f32 %v2244, 1.442695
      %v2288 = vpow.pop %v2287
      %v2289 = vmul.f32 %v2245, 1.442695
      %v2290 = vpow.pop %v2289
      %v2291 = vmul.f32 %v2246, 1.442695
      %v2292 = vpow.pop %v2291
      %v2293 = vmul.f32 %v2247, 1.442695
      %v2294 = vpow.pop %v2293
      %v2295 = vmul.f32 %v2248, 1.442695
      %v2296 = vpow.pop %v2295
      %v2297 = vmul.f32 %v2249, 1.442695
      %v2298 = vpow.pop %v2297
      %v2299 = vmul.f32 %v2250, 1.442695
      %v2300 = vpow.pop %v2299
      %v2301 = vmul.f32 %v2251, 1.442695
      %v2302 = vpow.pop %v2301
      %v2303 = vmul.f32 %v2252, 1.442695
      %v2304 = vpow.pop %v2303
      %v2305 = vmul.f32 %v2253, 1.442695
      %v2306 = vpow.pop %v2305
      %v2307 = vmul.f32 %v2254, 1.442695
      %v2308 = vpow.pop %v2307
      %v2309 = vmul.f32 %v2255, 1.442695
      %v2310 = vpow.pop %v2309
      %v2311 = vmul.f32 %v2256, 1.442695
      %v2312 = vpow.pop %v2311
      %v2313 = vmul.f32 %v2257, 1.442695
      %v2314 = vpow.pop %v2313
      %v2315 = vmul.f32 %v2258, 1.442695
      %v2316 = vpow.pop %v2315
      %v2317 = vmul.f32 %v2259, 1.442695
      %v2318 = vpow.pop %v2317
      %v2319 = vmul.f32 %v2260, 1.442695
      %v2320 = vpow.pop %v2319
      %v2321 = vmul.f32 %v2261, 1.442695
      %v2322 = vpow.pop %v2321
      %v2323 = vmul.f32 %v2262, 1.442695
      %v2324 = vpow.pop %v2323
      %v2325 = vmul.f32 %v2263, 1.442695
      %v2326 = vpow.pop %v2325
      %v2327 = vmul.f32 %v2264, 1.442695
      %v2328 = vpow.pop %v2327
      %v2329 = vadd.f32 %v2266, 1.0
      %v2330 = vadd.f32 %v2268, 1.0
      %v2331 = vadd.f32 %v2270, 1.0
      %v2332 = vadd.f32 %v2272, 1.0
      %v2333 = vadd.f32 %v2274, 1.0
      %v2334 = vadd.f32 %v2276, 1.0
      %v2335 = vadd.f32 %v2278, 1.0
      %v2336 = vadd.f32 %v2280, 1.0
      %v2337 = vadd.f32 %v2282, 1.0
      %v2338 = vadd.f32 %v2284, 1.0
      %v2339 = vadd.f32 %v2286, 1.0
      %v2340 = vadd.f32 %v2288, 1.0
      %v2341 = vadd.f32 %v2290, 1.0
      %v2342 = vadd.f32 %v2292, 1.0
      %v2343 = vadd.f32 %v2294, 1.0
      %v2344 = vadd.f32 %v2296, 1.0
      %v2345 = vadd.f32 %v2298, 1.0
      %v2346 = vadd.f32 %v2300, 1.0
      %v2347 = vadd.f32 %v2302, 1.0
      %v2348 = vadd.f32 %v2304, 1.0
      %v2349 = vadd.f32 %v2306, 1.0
      %v2350 = vadd.f32 %v2308, 1.0
      %v2351 = vadd.f32 %v2310, 1.0
      %v2352 = vadd.f32 %v2312, 1.0
      %v2353 = vadd.f32 %v2314, 1.0
      %v2354 = vadd.f32 %v2316, 1.0
      %v2355 = vadd.f32 %v2318, 1.0
      %v2356 = vadd.f32 %v2320, 1.0
      %v2357 = vadd.f32 %v2322, 1.0
      %v2358 = vadd.f32 %v2324, 1.0
      %v2359 = vadd.f32 %v2326, 1.0
      %v2360 = vadd.f32 %v2328, 1.0
      %v2361 = vrcp.pop %v2329
      %v2362 = vmul.f32 1.0, %v2361
      %v2363 = vrcp.pop %v2330
      %v2364 = vmul.f32 1.0, %v2363
      %v2365 = vrcp.pop %v2331
      %v2366 = vmul.f32 1.0, %v2365
      %v2367 = vrcp.pop %v2332
      %v2368 = vmul.f32 1.0, %v2367
      %v2369 = vrcp.pop %v2333
      %v2370 = vmul.f32 1.0, %v2369
      %v2371 = vrcp.pop %v2334
      %v2372 = vmul.f32 1.0, %v2371
      %v2373 = vrcp.pop %v2335
      %v2374 = vmul.f32 1.0, %v2373
      %v2375 = vrcp.pop %v2336
      %v2376 = vmul.f32 1.0, %v2375
      %v2377 = vrcp.pop %v2337
      %v2378 = vmul.f32 1.0, %v2377
      %v2379 = vrcp.pop %v2338
      %v2380 = vmul.f32 1.0, %v2379
      %v2381 = vrcp.pop %v2339
      %v2382 = vmul.f32 1.0, %v2381
      %v2383 = vrcp.pop %v2340
      %v2384 = vmul.f32 1.0, %v2383
      %v2385 = vrcp.pop %v2341
      %v2386 = vmul.f32 1.0, %v2385
      %v2387 = vrcp.pop %v2342
      %v2388 = vmul.f32 1.0, %v2387
      %v2389 = vrcp.pop %v2343
      %v2390 = vmul.f32 1.0, %v2389
      %v2391 = vrcp.pop %v2344
      %v2392 = vmul.f32 1.0, %v2391
      %v2393 = vrcp.pop %v2345
      %v2394 = vmul.f32 1.0, %v2393
      %v2395 = vrcp.pop %v2346
      %v2396 = vmul.f32 1.0, %v2395
      %v2397 = vrcp.pop %v2347
      %v2398 = vmul.f32 1.0, %v2397
      %v2399 = vrcp.pop %v2348
      %v2400 = vmul.f32 1.0, %v2399
      %v2401 = vrcp.pop %v2349
      %v2402 = vmul.f32 1.0, %v2401
      %v2403 = vrcp.pop %v2350
      %v2404 = vmul.f32 1.0, %v2403
      %v2405 = vrcp.pop %v2351
      %v2406 = vmul.f32 1.0, %v2405
      %v2407 = vrcp.pop %v2352
      %v2408 = vmul.f32 1.0, %v2407
      %v2409 = vrcp.pop %v2353
      %v2410 = vmul.f32 1.0, %v2409
      %v2411 = vrcp.pop %v2354
      %v2412 = vmul.f32 1.0, %v2411
      %v2413 = vrcp.pop %v2355
      %v2414 = vmul.f32 1.0, %v2413
      %v2415 = vrcp.pop %v2356
      %v2416 = vmul.f32 1.0, %v2415
      %v2417 = vrcp.pop %v2357
      %v2418 = vmul.f32 1.0, %v2417
      %v2419 = vrcp.pop %v2358
      %v2420 = vmul.f32 1.0, %v2419
      %v2421 = vrcp.pop %v2359
      %v2422 = vmul.f32 1.0, %v2421
      %v2423 = vrcp.pop %v2360
      %v2424 = vmul.f32 1.0, %v2423
      %v2425 = vxor.u32 %v2229, 2147483648
      %v2426 = vxor.u32 %v2231, 2147483648
      %v2427 = vmul.f32 %v2425, 1.442695
      %v2428 = vpow.pop %v2427
      %v2429 = vmul.f32 %v2426, 1.442695
      %v2430 = vpow.pop %v2429
      %v2431 = vadd.f32 %v2428, 1.0
      %v2432 = vadd.f32 %v2430, 1.0
      %v2433 = vrcp.pop %v2431
      %v2434 = vmul.f32 1.0, %v2433
      %v2435 = vrcp.pop %v2432
      %v2436 = vmul.f32 1.0, %v2435
      %2438 = vset.pattern.permute.xlu0 0
      %2439 = vperm.xlu0 %2438, %v2362
      %v2440 = vpop.permute.xlu0 %2439
      %2443 = vset.pattern.permute.xlu0 0
      %2444 = vperm.xlu0 %2443, %v2364
      %v2445 = vpop.permute.xlu0 %2444
      %2448 = vset.pattern.permute.xlu0 0
      %2449 = vperm.xlu0 %2448, %v2366
      %v2450 = vpop.permute.xlu0 %2449
      %2453 = vset.pattern.permute.xlu0 0
      %2454 = vperm.xlu0 %2453, %v2368
      %v2455 = vpop.permute.xlu0 %2454
      %2458 = vset.pattern.permute.xlu0 0
      %2459 = vperm.xlu0 %2458, %v2370
      %v2460 = vpop.permute.xlu0 %2459
      %2463 = vset.pattern.permute.xlu0 0
      %2464 = vperm.xlu0 %2463, %v2372
      %v2465 = vpop.permute.xlu0 %2464
      %2468 = vset.pattern.permute.xlu0 0
      %2469 = vperm.xlu0 %2468, %v2374
      %v2470 = vpop.permute.xlu0 %2469
      %2473 = vset.pattern.permute.xlu0 0
      %2474 = vperm.xlu0 %2473, %v2376
      %v2475 = vpop.permute.xlu0 %2474
      %2478 = vset.pattern.permute.xlu0 0
      %2479 = vperm.xlu0 %2478, %v2378
      %v2480 = vpop.permute.xlu0 %2479
      %2483 = vset.pattern.permute.xlu0 0
      %2484 = vperm.xlu0 %2483, %v2380
      %v2485 = vpop.permute.xlu0 %2484
      %2488 = vset.pattern.permute.xlu0 0
      %2489 = vperm.xlu0 %2488, %v2382
      %v2490 = vpop.permute.xlu0 %2489
      %2493 = vset.pattern.permute.xlu0 0
      %2494 = vperm.xlu0 %2493, %v2384
      %v2495 = vpop.permute.xlu0 %2494
      %2498 = vset.pattern.permute.xlu0 0
      %2499 = vperm.xlu0 %2498, %v2386
      %v2500 = vpop.permute.xlu0 %2499
      %2503 = vset.pattern.permute.xlu0 0
      %2504 = vperm.xlu0 %2503, %v2388
      %v2505 = vpop.permute.xlu0 %2504
      %2508 = vset.pattern.permute.xlu0 0
      %2509 = vperm.xlu0 %2508, %v2390
      %v2510 = vpop.permute.xlu0 %2509
      %2513 = vset.pattern.permute.xlu0 0
      %2514 = vperm.xlu0 %2513, %v2392
      %v2515 = vpop.permute.xlu0 %2514
      %2518 = vset.pattern.permute.xlu0 0
      %2519 = vperm.xlu0 %2518, %v2394
      %v2520 = vpop.permute.xlu0 %2519
      %2523 = vset.pattern.permute.xlu0 0
      %2524 = vperm.xlu0 %2523, %v2396
      %v2525 = vpop.permute.xlu0 %2524
      %2528 = vset.pattern.permute.xlu0 0
      %2529 = vperm.xlu0 %2528, %v2398
      %v2530 = vpop.permute.xlu0 %2529
      %2533 = vset.pattern.permute.xlu0 0
      %2534 = vperm.xlu0 %2533, %v2400
      %v2535 = vpop.permute.xlu0 %2534
      %2538 = vset.pattern.permute.xlu0 0
      %2539 = vperm.xlu0 %2538, %v2402
      %v2540 = vpop.permute.xlu0 %2539
      %2543 = vset.pattern.permute.xlu0 0
      %2544 = vperm.xlu0 %2543, %v2404
      %v2545 = vpop.permute.xlu0 %2544
      %2548 = vset.pattern.permute.xlu0 0
      %2549 = vperm.xlu0 %2548, %v2406
      %v2550 = vpop.permute.xlu0 %2549
      %2553 = vset.pattern.permute.xlu0 0
      %2554 = vperm.xlu0 %2553, %v2408
      %v2555 = vpop.permute.xlu0 %2554
      %2558 = vset.pattern.permute.xlu0 0
      %2559 = vperm.xlu0 %2558, %v2410
      %v2560 = vpop.permute.xlu0 %2559
      %2563 = vset.pattern.permute.xlu0 0
      %2564 = vperm.xlu0 %2563, %v2412
      %v2565 = vpop.permute.xlu0 %2564
      %2568 = vset.pattern.permute.xlu0 0
      %2569 = vperm.xlu0 %2568, %v2414
      %v2570 = vpop.permute.xlu0 %2569
      %2573 = vset.pattern.permute.xlu0 0
      %2574 = vperm.xlu0 %2573, %v2416
      %v2575 = vpop.permute.xlu0 %2574
      %2578 = vset.pattern.permute.xlu0 0
      %2579 = vperm.xlu0 %2578, %v2418
      %v2580 = vpop.permute.xlu0 %2579
      %2583 = vset.pattern.permute.xlu0 0
      %2584 = vperm.xlu0 %2583, %v2420
      %v2585 = vpop.permute.xlu0 %2584
      %2588 = vset.pattern.permute.xlu0 0
      %2589 = vperm.xlu0 %2588, %v2422
      %v2590 = vpop.permute.xlu0 %2589
      %2593 = vset.pattern.permute.xlu0 0
      %2594 = vperm.xlu0 %2593, %v2424
      %v2595 = vpop.permute.xlu0 %2594
      %v2597 = vlaneseq
      %v2598 = vshrl.u32 %v2597, 7
      %v2599 = vsub.s32 0, %v2598
      %v2600 = vrot.slane %v2434, %v2599
      %v2601 = vlaneseq
      %v2602 = vshrl.u32 %v2601, 7
      %v2603 = vsub.s32 0, %v2602
      %v2604 = vrot.slane %v2436, %v2603
      %v2605 = vadd.f32 %v2440, %v2600
      %v2606 = vadd.f32 %v2440, %v2604
      %v2607 = vadd.f32 %v2445, %v2600
      %v2608 = vadd.f32 %v2445, %v2604
      %v2609 = vadd.f32 %v2450, %v2600
      %v2610 = vadd.f32 %v2450, %v2604
      %v2611 = vadd.f32 %v2455, %v2600
      %v2612 = vadd.f32 %v2455, %v2604
      %v2613 = vadd.f32 %v2460, %v2600
      %v2614 = vadd.f32 %v2460, %v2604
      %v2615 = vadd.f32 %v2465, %v2600
      %v2616 = vadd.f32 %v2465, %v2604
      %v2617 = vadd.f32 %v2470, %v2600
      %v2618 = vadd.f32 %v2470, %v2604
      %v2619 = vadd.f32 %v2475, %v2600
      %v2620 = vadd.f32 %v2475, %v2604
      %v2621 = vadd.f32 %v2480, %v2600
      %v2622 = vadd.f32 %v2480, %v2604
      %v2623 = vadd.f32 %v2485, %v2600
      %v2624 = vadd.f32 %v2485, %v2604
      %v2625 = vadd.f32 %v2490, %v2600
      %v2626 = vadd.f32 %v2490, %v2604
      %v2627 = vadd.f32 %v2495, %v2600
      %v2628 = vadd.f32 %v2495, %v2604
      %v2629 = vadd.f32 %v2500, %v2600
      %v2630 = vadd.f32 %v2500, %v2604
      %v2631 = vadd.f32 %v2505, %v2600
      %v2632 = vadd.f32 %v2505, %v2604
      %v2633 = vadd.f32 %v2510, %v2600
      %v2634 = vadd.f32 %v2510, %v2604
      %v2635 = vadd.f32 %v2515, %v2600
      %v2636 = vadd.f32 %v2515, %v2604
      %v2637 = vadd.f32 %v2520, %v2600
      %v2638 = vadd.f32 %v2520, %v2604
      %v2639 = vadd.f32 %v2525, %v2600
      %v2640 = vadd.f32 %v2525, %v2604
      %v2641 = vadd.f32 %v2530, %v2600
      %v2642 = vadd.f32 %v2530, %v2604
      %v2643 = vadd.f32 %v2535, %v2600
      %v2644 = vadd.f32 %v2535, %v2604
      %v2645 = vadd.f32 %v2540, %v2600
      %v2646 = vadd.f32 %v2540, %v2604
      %v2647 = vadd.f32 %v2545, %v2600
      %v2648 = vadd.f32 %v2545, %v2604
      %v2649 = vadd.f32 %v2550, %v2600
      %v2650 = vadd.f32 %v2550, %v2604
      %v2651 = vadd.f32 %v2555, %v2600
      %v2652 = vadd.f32 %v2555, %v2604
      %v2653 = vadd.f32 %v2560, %v2600
      %v2654 = vadd.f32 %v2560, %v2604
      %v2655 = vadd.f32 %v2565, %v2600
      %v2656 = vadd.f32 %v2565, %v2604
      %v2657 = vadd.f32 %v2570, %v2600
      %v2658 = vadd.f32 %v2570, %v2604
      %v2659 = vadd.f32 %v2575, %v2600
      %v2660 = vadd.f32 %v2575, %v2604
      %v2661 = vadd.f32 %v2580, %v2600
      %v2662 = vadd.f32 %v2580, %v2604
      %v2663 = vadd.f32 %v2585, %v2600
      %v2664 = vadd.f32 %v2585, %v2604
      %v2665 = vadd.f32 %v2590, %v2600
      %v2666 = vadd.f32 %v2590, %v2604
      %v2667 = vadd.f32 %v2595, %v2600
      %v2668 = vadd.f32 %v2595, %v2604
      %v2669 = vmul.f32 %v2605, %v335
      %v2670 = vmul.f32 %v2606, %v336
      %v2671 = vmul.f32 %v2607, %v337
      %v2672 = vmul.f32 %v2608, %v338
      %v2673 = vmul.f32 %v2609, %v339
      %v2674 = vmul.f32 %v2610, %v340
      %v2675 = vmul.f32 %v2611, %v341
      %v2676 = vmul.f32 %v2612, %v342
      %v2677 = vmul.f32 %v2613, %v343
      %v2678 = vmul.f32 %v2614, %v344
      %v2679 = vmul.f32 %v2615, %v345
      %v2680 = vmul.f32 %v2616, %v346
      %v2681 = vmul.f32 %v2617, %v347
      %v2682 = vmul.f32 %v2618, %v348
      %v2683 = vmul.f32 %v2619, %v349
      %v2684 = vmul.f32 %v2620, %v350
      %v2685 = vmul.f32 %v2621, %v351
      %v2686 = vmul.f32 %v2622, %v352
      %v2687 = vmul.f32 %v2623, %v353
      %v2688 = vmul.f32 %v2624, %v354
      %v2689 = vmul.f32 %v2625, %v355
      %v2690 = vmul.f32 %v2626, %v356
      %v2691 = vmul.f32 %v2627, %v357
      %v2692 = vmul.f32 %v2628, %v358
      %v2693 = vmul.f32 %v2629, %v359
      %v2694 = vmul.f32 %v2630, %v360
      %v2695 = vmul.f32 %v2631, %v361
      %v2696 = vmul.f32 %v2632, %v362
      %v2697 = vmul.f32 %v2633, %v363
      %v2698 = vmul.f32 %v2634, %v364
      %v2699 = vmul.f32 %v2635, %v365
      %v2700 = vmul.f32 %v2636, %v366
      %v2701 = vmul.f32 %v2637, %v367
      %v2702 = vmul.f32 %v2638, %v368
      %v2703 = vmul.f32 %v2639, %v369
      %v2704 = vmul.f32 %v2640, %v370
      %v2705 = vmul.f32 %v2641, %v371
      %v2706 = vmul.f32 %v2642, %v372
      %v2707 = vmul.f32 %v2643, %v373
      %v2708 = vmul.f32 %v2644, %v374
      %v2709 = vmul.f32 %v2645, %v375
      %v2710 = vmul.f32 %v2646, %v376
      %v2711 = vmul.f32 %v2647, %v377
      %v2712 = vmul.f32 %v2648, %v378
      %v2713 = vmul.f32 %v2649, %v379
      %v2714 = vmul.f32 %v2650, %v380
      %v2715 = vmul.f32 %v2651, %v381
      %v2716 = vmul.f32 %v2652, %v382
      %v2717 = vmul.f32 %v2653, %v383
      %v2718 = vmul.f32 %v2654, %v384
      %v2719 = vmul.f32 %v2655, %v385
      %v2720 = vmul.f32 %v2656, %v386
      %v2721 = vmul.f32 %v2657, %v387
      %v2722 = vmul.f32 %v2658, %v388
      %v2723 = vmul.f32 %v2659, %v389
      %v2724 = vmul.f32 %v2660, %v390
      %v2725 = vmul.f32 %v2661, %v391
      %v2726 = vmul.f32 %v2662, %v392
      %v2727 = vmul.f32 %v2663, %v393
      %v2728 = vmul.f32 %v2664, %v394
      %v2729 = vmul.f32 %v2665, %v395
      %v2730 = vmul.f32 %v2666, %v396
      %v2731 = vmul.f32 %v2667, %v397
      %v2732 = vmul.f32 %v2668, %v398
      %2733 = vst [vmem:[%s332] sm:$0xff] %v2669
      %2734 = vst [vmem:[%s332 + $0x8] sm:$0xff] %v2670
      %2735 = vst [vmem:[%s332 + $0x10] sm:$0xff] %v2671
      %2736 = vst [vmem:[%s332 + $0x18] sm:$0xff] %v2672
      %2737 = vst [vmem:[%s332 + $0x20] sm:$0xff] %v2673
      %2738 = vst [vmem:[%s332 + $0x28] sm:$0xff] %v2674
      %2739 = vst [vmem:[%s332 + $0x30] sm:$0xff] %v2675
      %2740 = vst [vmem:[%s332 + $0x38] sm:$0xff] %v2676
      %2741 = vst [vmem:[%s332 + $0x40] sm:$0xff] %v2677
      %2742 = vst [vmem:[%s332 + $0x48] sm:$0xff] %v2678
      %2743 = vst [vmem:[%s332 + $0x50] sm:$0xff] %v2679
      %2744 = vst [vmem:[%s332 + $0x58] sm:$0xff] %v2680
      %2745 = vst [vmem:[%s332 + $0x60] sm:$0xff] %v2681
      %2746 = vst [vmem:[%s332 + $0x68] sm:$0xff] %v2682
      %2747 = vst [vmem:[%s332 + $0x70] sm:$0xff] %v2683
      %2748 = vst [vmem:[%s332 + $0x78] sm:$0xff] %v2684
      %2749 = vst [vmem:[%s332 + $0x80] sm:$0xff] %v2685
      %2750 = vst [vmem:[%s332 + $0x88] sm:$0xff] %v2686
      %2751 = vst [vmem:[%s332 + $0x90] sm:$0xff] %v2687
      %2752 = vst [vmem:[%s332 + $0x98] sm:$0xff] %v2688
      %2753 = vst [vmem:[%s332 + $0xa0] sm:$0xff] %v2689
      %2754 = vst [vmem:[%s332 + $0xa8] sm:$0xff] %v2690
      %2755 = vst [vmem:[%s332 + $0xb0] sm:$0xff] %v2691
      %2756 = vst [vmem:[%s332 + $0xb8] sm:$0xff] %v2692
      %2757 = vst [vmem:[%s332 + $0xc0] sm:$0xff] %v2693
      %2758 = vst [vmem:[%s332 + $0xc8] sm:$0xff] %v2694
      %2759 = vst [vmem:[%s332 + $0xd0] sm:$0xff] %v2695
      %2760 = vst [vmem:[%s332 + $0xd8] sm:$0xff] %v2696
      %2761 = vst [vmem:[%s332 + $0xe0] sm:$0xff] %v2697
      %2762 = vst [vmem:[%s332 + $0xe8] sm:$0xff] %v2698
      %2763 = vst [vmem:[%s332 + $0xf0] sm:$0xff] %v2699
      %2764 = vst [vmem:[%s332 + $0xf8] sm:$0xff] %v2700
      %2765 = vst [vmem:[%s332 + $0x100] sm:$0xff] %v2701
      %2766 = vst [vmem:[%s332 + $0x108] sm:$0xff] %v2702
      %2767 = vst [vmem:[%s332 + $0x110] sm:$0xff] %v2703
      %2768 = vst [vmem:[%s332 + $0x118] sm:$0xff] %v2704
      %2769 = vst [vmem:[%s332 + $0x120] sm:$0xff] %v2705
      %2770 = vst [vmem:[%s332 + $0x128] sm:$0xff] %v2706
      %2771 = vst [vmem:[%s332 + $0x130] sm:$0xff] %v2707
      %2772 = vst [vmem:[%s332 + $0x138] sm:$0xff] %v2708
      %2773 = vst [vmem:[%s332 + $0x140] sm:$0xff] %v2709
      %2774 = vst [vmem:[%s332 + $0x148] sm:$0xff] %v2710
      %2775 = vst [vmem:[%s332 + $0x150] sm:$0xff] %v2711
      %2776 = vst [vmem:[%s332 + $0x158] sm:$0xff] %v2712
      %2777 = vst [vmem:[%s332 + $0x160] sm:$0xff] %v2713
      %2778 = vst [vmem:[%s332 + $0x168] sm:$0xff] %v2714
      %2779 = vst [vmem:[%s332 + $0x170] sm:$0xff] %v2715
      %2780 = vst [vmem:[%s332 + $0x178] sm:$0xff] %v2716
      %2781 = vst [vmem:[%s332 + $0x180] sm:$0xff] %v2717
      %2782 = vst [vmem:[%s332 + $0x188] sm:$0xff] %v2718
      %2783 = vst [vmem:[%s332 + $0x190] sm:$0xff] %v2719
      %2784 = vst [vmem:[%s332 + $0x198] sm:$0xff] %v2720
      %2785 = vst [vmem:[%s332 + $0x1a0] sm:$0xff] %v2721
      %2786 = vst [vmem:[%s332 + $0x1a8] sm:$0xff] %v2722
      %2787 = vst [vmem:[%s332 + $0x1b0] sm:$0xff] %v2723
      %2788 = vst [vmem:[%s332 + $0x1b8] sm:$0xff] %v2724
      %2789 = vst [vmem:[%s332 + $0x1c0] sm:$0xff] %v2725
      %2790 = vst [vmem:[%s332 + $0x1c8] sm:$0xff] %v2726
      %2791 = vst [vmem:[%s332 + $0x1d0] sm:$0xff] %v2727
      %2792 = vst [vmem:[%s332 + $0x1d8] sm:$0xff] %v2728
      %2793 = vst [vmem:[%s332 + $0x1e0] sm:$0xff] %v2729
      %2794 = vst [vmem:[%s332 + $0x1e8] sm:$0xff] %v2730
      %2795 = vst [vmem:[%s332 + $0x1f0] sm:$0xff] %v2731
      %2796 = vst [vmem:[%s332 + $0x1f8] sm:$0xff] %v2732
      %p2797 = scmp.lt.s32.totalorder %s20, 1
      %s2798 = scalar_select %p2797, %s20, 1
      %s2799 = smul.addr %s2798, 64
      %s2800 = smul.addr %s2799, 8
      %s2801 = scalar_lea.vmem %s9, %s2800
      // Predicated region
      $region57: #{psa_forward.1} parent=55 // pred_check
        %p2802 = pneg %p232
      $region58: #{psa_forward.1} parent=55 // pred_check_branch
        %2804 = sbr.rel (%p2802) target = $region60
      $region59: #{psa_forward.1} parent=55 // pred_region
        _
      $region60: #{psa_forward.1} parent=55 // pred_fallthru
        _
    $region56: #{psa_forward.1} parent=5 // pred_fallthru
      _
    %p2805 = scmp.le.s32.totalorder 2, %s15
    // Predicated region
    $region61: #{psa_forward.1} parent=5 // pred_check
      %p2806 = pneg %p2805
    $region62: #{psa_forward.1} parent=5 // pred_check_branch
      %2808 = sbr.rel (%p2806) target = $region64
    $region63: #{psa_forward.1} parent=5 // pred_region
      %s2809 = ssub.s32 %s15, 2
      // Predicated region
      $region65: #{psa_forward.1} parent=63 // pred_check
        %p2810 = pneg %p238
      $region66: #{psa_forward.1} parent=63 // pred_check_branch
        %2812 = sbr.rel (%p2810) target = $region68
      $region67: #{psa_forward.1} parent=63 // pred_region
        %p2813 = scmp.lt.s32.totalorder %s21, 1
        %s2814 = scalar_select %p2813, %s21, 1
        %s2815 = smul.addr %s2814, 64
        %s2816 = smul.addr %s2815, 8
        %s2817 = scalar_lea.vmem %s9, %s2816
      $region68: #{psa_forward.1} parent=63 // pred_fallthru
        _
    $region64: #{psa_forward.1} parent=5 // pred_fallthru
      _
  $region6: #{psa_forward.1} parent=0 // loop_footer
    %s19 = sadd.s32 1, %s15
  $region7: #{psa_forward.1} parent=0 // loop_footer_branch
    %14 = sbr.rel target = $region3
  $region8: #{psa_forward.1} parent=0 // loop_exit
    _

</llo_original>
